<compile_context>
chip_gen: v7x
topology: tpu7x:2x2x1
jax: 0.10.0
libtpu: 0.0.40
codegen_flags: <defaults>
</compile_context>

<pallas_src>
import jax
import jax.numpy as jnp
from jax import lax
from jax.experimental import pallas as pl
from jax.experimental.pallas import tpu as pltpu


def _make_ca_kernel(nb, hw_true, cr):
    """Build the fused CALayer kernel for one (nb, C, HWp) block."""
    inv_hw = 1.0 / float(hw_true)

    def kernel(x_ref, w_ref, out_ref):
        # Packed 1x1-conv weights, resident across the whole grid (tiny: C x 2*Cr).
        #   w_ref[:, :cr] = w1^T  (Cin, Cout)      -> conv1 (C -> Cr)
        #   w_ref[:, cr:] = w2    (Cout_full, Cr)  -> conv2 (Cr -> C)
        w = w_ref[...].astype(jnp.float32)
        w1t = w[:, :cr]                                              # (C, Cr)
        w2 = w[:, cr:]                                               # (C, Cr)

        def per_image(i, carry):
            # One image at a time keeps live ranges to ~16 vregs (C=64, HW=256 f32).
            xi = x_ref[i].astype(jnp.float32)                        # (C, HWp), f32 compute
            # Global average pool over the lane axis (padded lanes are zero; divide
            # by the true HW so padding doesn't bias the mean).
            pooled = jnp.sum(xi, axis=-1, keepdims=True) * inv_hw    # (C, 1)
            # conv1 (C -> Cr, no bias) + ReLU: broadcast-FMA + sublane reduce.
            hidden = jnp.sum(w1t * pooled, axis=0, keepdims=True)    # (1, Cr)
            hidden = jnp.maximum(hidden, 0.0)
            # conv2 (Cr -> C, no bias) + sigmoid: broadcast-FMA + lane reduce.
            gate = jnp.sum(w2 * hidden, axis=-1, keepdims=True)      # (C, 1)
            gate = jax.nn.sigmoid(gate)                              # exact (1e-5 ref tol)
            # Channel gating: (C,1) gate broadcast across the lane-dense spatial axis.
            out_ref[i] = (xi * gate).astype(out_ref.dtype)
            return carry

        lax.fori_loop(0, nb, per_image, 0, unroll=True)

    return kernel


def ca_layer_forward(x_nchw, w1, w2, *, block_batch=None):
    """CALayer forward: out = x * sigmoid(conv1x1(relu(conv1x1(avgpool(x))))), bias=False.

    x_nchw: (N, C, H, W)  any float dtype (f32 or bf16 storage; compute is f32)
    w1:     (C//r, C)     first  1x1 conv weight (torch (C//r, C, 1, 1) squeezed)
    w2:     (C, C//r)     second 1x1 conv weight (torch (C, C//r, 1, 1) squeezed)
    """
    N, C, H, W = x_nchw.shape
    Cr = w1.shape[0]
    HW = H * W
    HWp = ((HW + 127) // 128) * 128          # lane-dense (unmasked vst) store width

    x3 = x_nchw.reshape(N, C, HW)            # free row-major reshape: NCHW -> (N, C, HW)
    if HWp != HW:
        x3 = jnp.pad(x3, ((0, 0), (0, 0), (0, HWp - HW)))

    # Pick the per-block batch: ~1 MiB blocks amortize DMA / per-step overhead, but keep
    # the grid >= 2 blocks so both v7x TensorCores get work under "parallel" semantics.
    itemsize = jnp.dtype(x_nchw.dtype).itemsize
    per_img_bytes = C * HWp * itemsize
    if block_batch is None:
        nb = max(1, (1 << 20) // per_img_bytes)
        if N >= 2:
            nb = min(nb, max(1, N // 2))
        nb = min(nb, N)
    else:
        nb = max(1, min(block_batch, N))

    n_blocks = pl.cdiv(N, nb)
    Np = n_blocks * nb
    if Np != N:                               # zero-pad batch to a multiple of nb
        x3 = jnp.pad(x3, ((0, Np - N), (0, 0), (0, 0)))

    # Pack both 1x1-conv weights into one resident (C, 2*Cr) input stream.
    w_packed = jnp.concatenate([jnp.transpose(w1, (1, 0)), w2], axis=1)

    out = pl.pallas_call(
        _make_ca_kernel(nb, HW, Cr),
        out_shape=jax.ShapeDtypeStruct((Np, C, HWp), x_nchw.dtype),
        grid=(n_blocks,),
        in_specs=[
            pl.BlockSpec((nb, C, HWp), lambda n: (n, 0, 0)),   # batched x block
            pl.BlockSpec((C, 2 * Cr), lambda n: (0, 0)),       # packed weights (resident)
        ],
        out_specs=pl.BlockSpec((nb, C, HWp), lambda n: (n, 0, 0)),
        compiler_params=pltpu.CompilerParams(
            dimension_semantics=("parallel",)),                # shard batch blocks across TCs
    )(x3, w_packed)

    return out[:N, :, :HW].reshape(N, C, H, W)


def _reference(x, w1, w2):
    """Plain-JAX reference matching the PyTorch CALayer (bias=False), f32 compute."""
    xf = x.astype(jnp.float32)
    y = jnp.mean(xf, axis=(2, 3), keepdims=True)               # (N, C, 1, 1)
    h = jax.nn.relu(jnp.einsum('rc,ncij->nrij', w1, y))         # 1x1 conv, no bias
    g = jax.nn.sigmoid(jnp.einsum('cr,nrij->ncij', w2, h))      # 1x1 conv, no bias
    return xf * g


if __name__ == "__main__":
    # CALayer(channel=64, reduction=16, bias=False)
    channel, reduction = 64, 16
    Cr = channel // reduction

    def make_case(key, N, H, W, dtype):
        kx, k1, k2 = jax.random.split(key, 3)
        x = jax.random.normal(kx, (N, channel, H, W), dtype=jnp.float32).astype(dtype)
        w1 = jax.random.normal(k1, (Cr, channel), jnp.float32) * (1.0 / jnp.sqrt(channel))
        w2 = jax.random.normal(k2, (channel, Cr), jnp.float32) * (1.0 / jnp.sqrt(Cr))
        return x, w1, w2

    # Case 1: f32, batched blocks (N=16 -> Nb=8 per block, grid=2), HW=256 (128-multiple).
    x, w1, w2 = make_case(jax.random.PRNGKey(0), 16, 16, 16, jnp.float32)
    y = jax.block_until_ready(ca_layer_forward(x, w1, w2))
    assert y.shape == x.shape, y.shape
    assert jnp.allclose(y, _reference(x, w1, w2), atol=1e-5, rtol=1e-5), "f32 mismatch"

    # Case 2: odd batch + non-128-multiple HW (H=W=14 -> HW=196 padded to 256 lanes).
    x, w1, w2 = make_case(jax.random.PRNGKey(1), 5, 14, 14, jnp.float32)
    y = jax.block_until_ready(ca_layer_forward(x, w1, w2))
    assert y.shape == x.shape, y.shape
    assert jnp.allclose(y, _reference(x, w1, w2), atol=1e-5, rtol=1e-5), "padded mismatch"

    # Case 3: bf16 storage (halves HBM traffic); compute stays f32 inside the kernel.
    x, w1, w2 = make_case(jax.random.PRNGKey(2), 16, 16, 16, jnp.bfloat16)
    y = jax.block_until_ready(ca_layer_forward(x, w1, w2))
    y_ref = _reference(x, w1, w2)
    assert jnp.allclose(y.astype(jnp.float32), y_ref, atol=3e-2, rtol=3e-2), "bf16 mismatch"

    print("KERNEL_OK")
</pallas_src>

<mosaic_0001>
module attributes {stable_mosaic.version = 11 : i64} {
  func.func @kernel(%arg0: i32, %arg1: memref<8x64x256xf32, #tpu.memory_space<vmem>>, %arg2: memref<64x8xf32, #tpu.memory_space<vmem>>, %arg3: memref<8x64x256xf32, #tpu.memory_space<vmem>>) attributes {dimension_semantics = [#tpu.dimension_semantics<parallel>], iteration_bounds = array<i64: 2>, scalar_prefetch = 0 : i64, scratch_operands = 0 : i64, tpu.core_type = #tpu.core_type<tc>, window_params = [{transform_indices = @transform_0, window_bounds = array<i64: 8, 64, 256>}, {pipeline_mode = #tpu.pipeline_mode<synchronous>, transform_indices = @transform_1, window_bounds = array<i64: 64, 8>}, {transform_indices = @transform_2, window_bounds = array<i64: 8, 64, 256>}]} {
    %c0 = arith.constant 0 : index
    %c0_0 = arith.constant 0 : index
    %0 = vector.load %arg2[%c0, %c0_0] : memref<64x8xf32, #tpu.memory_space<vmem>>, vector<64x8xf32>
    %1 = vector.extract_strided_slice %0 {offsets = [0, 0], sizes = [64, 4], strides = [1, 1]} : vector<64x8xf32> to vector<64x4xf32>
    %2 = vector.extract_strided_slice %0 {offsets = [0, 4], sizes = [64, 4], strides = [1, 1]} : vector<64x8xf32> to vector<64x4xf32>
    %c0_i32 = arith.constant 0 : i32
    %3 = arith.index_cast %c0_i32 : i32 to index
    %c0_1 = arith.constant 0 : index
    %c0_2 = arith.constant 0 : index
    %4 = vector.load %arg1[%3, %c0_1, %c0_2] : memref<8x64x256xf32, #tpu.memory_space<vmem>>, vector<1x64x256xf32>
    %5 = vector.shape_cast %4 : vector<1x64x256xf32> to vector<64x256xf32>
    %cst = arith.constant dense<0.000000e+00> : vector<64xf32>
    %6 = vector.multi_reduction <add>, %5, %cst [1] : vector<64x256xf32> to vector<64xf32>
    %7 = vector.shape_cast %6 : vector<64xf32> to vector<64x1xf32>
    %cst_3 = arith.constant 3.906250e-03 : f32
    %8 = vector.broadcast %cst_3 : f32 to vector<64x1xf32>
    %9 = arith.mulf %7, %8 : vector<64x1xf32>
    %10 = vector.broadcast %9 : vector<64x1xf32> to vector<64x4xf32>
    %11 = arith.mulf %1, %10 : vector<64x4xf32>
    %cst_4 = arith.constant dense<0.000000e+00> : vector<4xf32>
    %12 = vector.multi_reduction <add>, %11, %cst_4 [0] : vector<64x4xf32> to vector<4xf32>
    %13 = vector.shape_cast %12 : vector<4xf32> to vector<1x4xf32>
    %cst_5 = arith.constant 0.000000e+00 : f32
    %14 = vector.broadcast %cst_5 : f32 to vector<1x4xf32>
    %15 = arith.maximumf %13, %14 : vector<1x4xf32>
    %16 = vector.broadcast %15 : vector<1x4xf32> to vector<64x4xf32>
    %17 = arith.mulf %2, %16 : vector<64x4xf32>
    %cst_6 = arith.constant dense<0.000000e+00> : vector<64xf32>
    %18 = vector.multi_reduction <add>, %17, %cst_6 [1] : vector<64x4xf32> to vector<64xf32>
    %19 = vector.shape_cast %18 : vector<64xf32> to vector<64x1xf32>
    %20 = arith.negf %19 : vector<64x1xf32>
    %21 = math.exp %20 : vector<64x1xf32>
    %cst_7 = arith.constant 1.000000e+00 : f32
    %22 = vector.broadcast %cst_7 : f32 to vector<64x1xf32>
    %23 = arith.addf %22, %21 : vector<64x1xf32>
    %24 = arith.divf %22, %23 : vector<64x1xf32>
    %25 = vector.broadcast %24 : vector<64x1xf32> to vector<64x256xf32>
    %26 = arith.mulf %5, %25 : vector<64x256xf32>
    %27 = arith.index_cast %c0_i32 : i32 to index
    %c0_8 = arith.constant 0 : index
    %c0_9 = arith.constant 0 : index
    %28 = vector.load %arg3[%27, %c0_8, %c0_9] : memref<8x64x256xf32, #tpu.memory_space<vmem>>, vector<1x64x256xf32>
    %29 = vector.shape_cast %28 : vector<1x64x256xf32> to vector<64x256xf32>
    %30 = vector.shape_cast %26 : vector<64x256xf32> to vector<1x64x256xf32>
    tpu.vector_store %arg3[%27, %c0_8, %c0_9], %30 {strides = array<i32>} : memref<8x64x256xf32, #tpu.memory_space<vmem>>, vector<1x64x256xf32>,
    %c1_i32 = arith.constant 1 : i32
    %31 = arith.index_cast %c1_i32 : i32 to index
    %c0_10 = arith.constant 0 : index
    %c0_11 = arith.constant 0 : index
    %32 = vector.load %arg1[%31, %c0_10, %c0_11] : memref<8x64x256xf32, #tpu.memory_space<vmem>>, vector<1x64x256xf32>
    %33 = vector.shape_cast %32 : vector<1x64x256xf32> to vector<64x256xf32>
    %cst_12 = arith.constant dense<0.000000e+00> : vector<64xf32>
    %34 = vector.multi_reduction <add>, %33, %cst_12 [1] : vector<64x256xf32> to vector<64xf32>
    %35 = vector.shape_cast %34 : vector<64xf32> to vector<64x1xf32>
    %cst_13 = arith.constant 3.906250e-03 : f32
    %36 = vector.broadcast %cst_13 : f32 to vector<64x1xf32>
    %37 = arith.mulf %35, %36 : vector<64x1xf32>
    %38 = vector.broadcast %37 : vector<64x1xf32> to vector<64x4xf32>
    %39 = arith.mulf %1, %38 : vector<64x4xf32>
    %cst_14 = arith.constant dense<0.000000e+00> : vector<4xf32>
    %40 = vector.multi_reduction <add>, %39, %cst_14 [0] : vector<64x4xf32> to vector<4xf32>
    %41 = vector.shape_cast %40 : vector<4xf32> to vector<1x4xf32>
    %cst_15 = arith.constant 0.000000e+00 : f32
    %42 = vector.broadcast %cst_15 : f32 to vector<1x4xf32>
    %43 = arith.maximumf %41, %42 : vector<1x4xf32>
    %44 = vector.broadcast %43 : vector<1x4xf32> to vector<64x4xf32>
    %45 = arith.mulf %2, %44 : vector<64x4xf32>
    %cst_16 = arith.constant dense<0.000000e+00> : vector<64xf32>
    %46 = vector.multi_reduction <add>, %45, %cst_16 [1] : vector<64x4xf32> to vector<64xf32>
    %47 = vector.shape_cast %46 : vector<64xf32> to vector<64x1xf32>
    %48 = arith.negf %47 : vector<64x1xf32>
    %49 = math.exp %48 : vector<64x1xf32>
    %cst_17 = arith.constant 1.000000e+00 : f32
    %50 = vector.broadcast %cst_17 : f32 to vector<64x1xf32>
    %51 = arith.addf %50, %49 : vector<64x1xf32>
    %52 = arith.divf %50, %51 : vector<64x1xf32>
    %53 = vector.broadcast %52 : vector<64x1xf32> to vector<64x256xf32>
    %54 = arith.mulf %33, %53 : vector<64x256xf32>
    %55 = arith.index_cast %c1_i32 : i32 to index
    %c0_18 = arith.constant 0 : index
    %c0_19 = arith.constant 0 : index
    %56 = vector.load %arg3[%55, %c0_18, %c0_19] : memref<8x64x256xf32, #tpu.memory_space<vmem>>, vector<1x64x256xf32>
    %57 = vector.shape_cast %56 : vector<1x64x256xf32> to vector<64x256xf32>
    %58 = vector.shape_cast %54 : vector<64x256xf32> to vector<1x64x256xf32>
    tpu.vector_store %arg3[%55, %c0_18, %c0_19], %58 {strides = array<i32>} : memref<8x64x256xf32, #tpu.memory_space<vmem>>, vector<1x64x256xf32>,
    %c2_i32 = arith.constant 2 : i32
    %59 = arith.index_cast %c2_i32 : i32 to index
    %c0_20 = arith.constant 0 : index
    %c0_21 = arith.constant 0 : index
    %60 = vector.load %arg1[%59, %c0_20, %c0_21] : memref<8x64x256xf32, #tpu.memory_space<vmem>>, vector<1x64x256xf32>
    %61 = vector.shape_cast %60 : vector<1x64x256xf32> to vector<64x256xf32>
    %cst_22 = arith.constant dense<0.000000e+00> : vector<64xf32>
    %62 = vector.multi_reduction <add>, %61, %cst_22 [1] : vector<64x256xf32> to vector<64xf32>
    %63 = vector.shape_cast %62 : vector<64xf32> to vector<64x1xf32>
    %cst_23 = arith.constant 3.906250e-03 : f32
    %64 = vector.broadcast %cst_23 : f32 to vector<64x1xf32>
    %65 = arith.mulf %63, %64 : vector<64x1xf32>
    %66 = vector.broadcast %65 : vector<64x1xf32> to vector<64x4xf32>
    %67 = arith.mulf %1, %66 : vector<64x4xf32>
    %cst_24 = arith.constant dense<0.000000e+00> : vector<4xf32>
    %68 = vector.multi_reduction <add>, %67, %cst_24 [0] : vector<64x4xf32> to vector<4xf32>
    %69 = vector.shape_cast %68 : vector<4xf32> to vector<1x4xf32>
    %cst_25 = arith.constant 0.000000e+00 : f32
    %70 = vector.broadcast %cst_25 : f32 to vector<1x4xf32>
    %71 = arith.maximumf %69, %70 : vector<1x4xf32>
    %72 = vector.broadcast %71 : vector<1x4xf32> to vector<64x4xf32>
    %73 = arith.mulf %2, %72 : vector<64x4xf32>
    %cst_26 = arith.constant dense<0.000000e+00> : vector<64xf32>
    %74 = vector.multi_reduction <add>, %73, %cst_26 [1] : vector<64x4xf32> to vector<64xf32>
    %75 = vector.shape_cast %74 : vector<64xf32> to vector<64x1xf32>
    %76 = arith.negf %75 : vector<64x1xf32>
    %77 = math.exp %76 : vector<64x1xf32>
    %cst_27 = arith.constant 1.000000e+00 : f32
    %78 = vector.broadcast %cst_27 : f32 to vector<64x1xf32>
    %79 = arith.addf %78, %77 : vector<64x1xf32>
    %80 = arith.divf %78, %79 : vector<64x1xf32>
    %81 = vector.broadcast %80 : vector<64x1xf32> to vector<64x256xf32>
    %82 = arith.mulf %61, %81 : vector<64x256xf32>
    %83 = arith.index_cast %c2_i32 : i32 to index
    %c0_28 = arith.constant 0 : index
    %c0_29 = arith.constant 0 : index
    %84 = vector.load %arg3[%83, %c0_28, %c0_29] : memref<8x64x256xf32, #tpu.memory_space<vmem>>, vector<1x64x256xf32>
    %85 = vector.shape_cast %84 : vector<1x64x256xf32> to vector<64x256xf32>
    %86 = vector.shape_cast %82 : vector<64x256xf32> to vector<1x64x256xf32>
    tpu.vector_store %arg3[%83, %c0_28, %c0_29], %86 {strides = array<i32>} : memref<8x64x256xf32, #tpu.memory_space<vmem>>, vector<1x64x256xf32>,
    %c3_i32 = arith.constant 3 : i32
    %87 = arith.index_cast %c3_i32 : i32 to index
    %c0_30 = arith.constant 0 : index
    %c0_31 = arith.constant 0 : index
    %88 = vector.load %arg1[%87, %c0_30, %c0_31] : memref<8x64x256xf32, #tpu.memory_space<vmem>>, vector<1x64x256xf32>
    %89 = vector.shape_cast %88 : vector<1x64x256xf32> to vector<64x256xf32>
    %cst_32 = arith.constant dense<0.000000e+00> : vector<64xf32>
    %90 = vector.multi_reduction <add>, %89, %cst_32 [1] : vector<64x256xf32> to vector<64xf32>
    %91 = vector.shape_cast %90 : vector<64xf32> to vector<64x1xf32>
    %cst_33 = arith.constant 3.906250e-03 : f32
    %92 = vector.broadcast %cst_33 : f32 to vector<64x1xf32>
    %93 = arith.mulf %91, %92 : vector<64x1xf32>
    %94 = vector.broadcast %93 : vector<64x1xf32> to vector<64x4xf32>
    %95 = arith.mulf %1, %94 : vector<64x4xf32>
    %cst_34 = arith.constant dense<0.000000e+00> : vector<4xf32>
    %96 = vector.multi_reduction <add>, %95, %cst_34 [0] : vector<64x4xf32> to vector<4xf32>
    %97 = vector.shape_cast %96 : vector<4xf32> to vector<1x4xf32>
    %cst_35 = arith.constant 0.000000e+00 : f32
    %98 = vector.broadcast %cst_35 : f32 to vector<1x4xf32>
    %99 = arith.maximumf %97, %98 : vector<1x4xf32>
    %100 = vector.broadcast %99 : vector<1x4xf32> to vector<64x4xf32>
    %101 = arith.mulf %2, %100 : vector<64x4xf32>
    %cst_36 = arith.constant dense<0.000000e+00> : vector<64xf32>
    %102 = vector.multi_reduction <add>, %101, %cst_36 [1] : vector<64x4xf32> to vector<64xf32>
    %103 = vector.shape_cast %102 : vector<64xf32> to vector<64x1xf32>
    %104 = arith.negf %103 : vector<64x1xf32>
    %105 = math.exp %104 : vector<64x1xf32>
    %cst_37 = arith.constant 1.000000e+00 : f32
    %106 = vector.broadcast %cst_37 : f32 to vector<64x1xf32>
    %107 = arith.addf %106, %105 : vector<64x1xf32>
    %108 = arith.divf %106, %107 : vector<64x1xf32>
    %109 = vector.broadcast %108 : vector<64x1xf32> to vector<64x256xf32>
    %110 = arith.mulf %89, %109 : vector<64x256xf32>
    %111 = arith.index_cast %c3_i32 : i32 to index
    %c0_38 = arith.constant 0 : index
    %c0_39 = arith.constant 0 : index
    %112 = vector.load %arg3[%111, %c0_38, %c0_39] : memref<8x64x256xf32, #tpu.memory_space<vmem>>, vector<1x64x256xf32>
    %113 = vector.shape_cast %112 : vector<1x64x256xf32> to vector<64x256xf32>
    %114 = vector.shape_cast %110 : vector<64x256xf32> to vector<1x64x256xf32>
    tpu.vector_store %arg3[%111, %c0_38, %c0_39], %114 {strides = array<i32>} : memref<8x64x256xf32, #tpu.memory_space<vmem>>, vector<1x64x256xf32>,
    %c4_i32 = arith.constant 4 : i32
    %115 = arith.index_cast %c4_i32 : i32 to index
    %c0_40 = arith.constant 0 : index
    %c0_41 = arith.constant 0 : index
    %116 = vector.load %arg1[%115, %c0_40, %c0_41] : memref<8x64x256xf32, #tpu.memory_space<vmem>>, vector<1x64x256xf32>
    %117 = vector.shape_cast %116 : vector<1x64x256xf32> to vector<64x256xf32>
    %cst_42 = arith.constant dense<0.000000e+00> : vector<64xf32>
    %118 = vector.multi_reduction <add>, %117, %cst_42 [1] : vector<64x256xf32> to vector<64xf32>
    %119 = vector.shape_cast %118 : vector<64xf32> to vector<64x1xf32>
    %cst_43 = arith.constant 3.906250e-03 : f32
    %120 = vector.broadcast %cst_43 : f32 to vector<64x1xf32>
    %121 = arith.mulf %119, %120 : vector<64x1xf32>
    %122 = vector.broadcast %121 : vector<64x1xf32> to vector<64x4xf32>
    %123 = arith.mulf %1, %122 : vector<64x4xf32>
    %cst_44 = arith.constant dense<0.000000e+00> : vector<4xf32>
    %124 = vector.multi_reduction <add>, %123, %cst_44 [0] : vector<64x4xf32> to vector<4xf32>
    %125 = vector.shape_cast %124 : vector<4xf32> to vector<1x4xf32>
    %cst_45 = arith.constant 0.000000e+00 : f32
    %126 = vector.broadcast %cst_45 : f32 to vector<1x4xf32>
    %127 = arith.maximumf %125, %126 : vector<1x4xf32>
    %128 = vector.broadcast %127 : vector<1x4xf32> to vector<64x4xf32>
    %129 = arith.mulf %2, %128 : vector<64x4xf32>
    %cst_46 = arith.constant dense<0.000000e+00> : vector<64xf32>
    %130 = vector.multi_reduction <add>, %129, %cst_46 [1] : vector<64x4xf32> to vector<64xf32>
    %131 = vector.shape_cast %130 : vector<64xf32> to vector<64x1xf32>
    %132 = arith.negf %131 : vector<64x1xf32>
    %133 = math.exp %132 : vector<64x1xf32>
    %cst_47 = arith.constant 1.000000e+00 : f32
    %134 = vector.broadcast %cst_47 : f32 to vector<64x1xf32>
    %135 = arith.addf %134, %133 : vector<64x1xf32>
    %136 = arith.divf %134, %135 : vector<64x1xf32>
    %137 = vector.broadcast %136 : vector<64x1xf32> to vector<64x256xf32>
    %138 = arith.mulf %117, %137 : vector<64x256xf32>
    %139 = arith.index_cast %c4_i32 : i32 to index
    %c0_48 = arith.constant 0 : index
    %c0_49 = arith.constant 0 : index
    %140 = vector.load %arg3[%139, %c0_48, %c0_49] : memref<8x64x256xf32, #tpu.memory_space<vmem>>, vector<1x64x256xf32>
    %141 = vector.shape_cast %140 : vector<1x64x256xf32> to vector<64x256xf32>
    %142 = vector.shape_cast %138 : vector<64x256xf32> to vector<1x64x256xf32>
    tpu.vector_store %arg3[%139, %c0_48, %c0_49], %142 {strides = array<i32>} : memref<8x64x256xf32, #tpu.memory_space<vmem>>, vector<1x64x256xf32>,
    %c5_i32 = arith.constant 5 : i32
    %143 = arith.index_cast %c5_i32 : i32 to index
    %c0_50 = arith.constant 0 : index
    %c0_51 = arith.constant 0 : index
    %144 = vector.load %arg1[%143, %c0_50, %c0_51] : memref<8x64x256xf32, #tpu.memory_space<vmem>>, vector<1x64x256xf32>
    %145 = vector.shape_cast %144 : vector<1x64x256xf32> to vector<64x256xf32>
    %cst_52 = arith.constant dense<0.000000e+00> : vector<64xf32>
    %146 = vector.multi_reduction <add>, %145, %cst_52 [1] : vector<64x256xf32> to vector<64xf32>
    %147 = vector.shape_cast %146 : vector<64xf32> to vector<64x1xf32>
    %cst_53 = arith.constant 3.906250e-03 : f32
    %148 = vector.broadcast %cst_53 : f32 to vector<64x1xf32>
    %149 = arith.mulf %147, %148 : vector<64x1xf32>
    %150 = vector.broadcast %149 : vector<64x1xf32> to vector<64x4xf32>
    %151 = arith.mulf %1, %150 : vector<64x4xf32>
    %cst_54 = arith.constant dense<0.000000e+00> : vector<4xf32>
    %152 = vector.multi_reduction <add>, %151, %cst_54 [0] : vector<64x4xf32> to vector<4xf32>
    %153 = vector.shape_cast %152 : vector<4xf32> to vector<1x4xf32>
    %cst_55 = arith.constant 0.000000e+00 : f32
    %154 = vector.broadcast %cst_55 : f32 to vector<1x4xf32>
    %155 = arith.maximumf %153, %154 : vector<1x4xf32>
    %156 = vector.broadcast %155 : vector<1x4xf32> to vector<64x4xf32>
    %157 = arith.mulf %2, %156 : vector<64x4xf32>
    %cst_56 = arith.constant dense<0.000000e+00> : vector<64xf32>
    %158 = vector.multi_reduction <add>, %157, %cst_56 [1] : vector<64x4xf32> to vector<64xf32>
    %159 = vector.shape_cast %158 : vector<64xf32> to vector<64x1xf32>
    %160 = arith.negf %159 : vector<64x1xf32>
    %161 = math.exp %160 : vector<64x1xf32>
    %cst_57 = arith.constant 1.000000e+00 : f32
    %162 = vector.broadcast %cst_57 : f32 to vector<64x1xf32>
    %163 = arith.addf %162, %161 : vector<64x1xf32>
    %164 = arith.divf %162, %163 : vector<64x1xf32>
    %165 = vector.broadcast %164 : vector<64x1xf32> to vector<64x256xf32>
    %166 = arith.mulf %145, %165 : vector<64x256xf32>
    %167 = arith.index_cast %c5_i32 : i32 to index
    %c0_58 = arith.constant 0 : index
    %c0_59 = arith.constant 0 : index
    %168 = vector.load %arg3[%167, %c0_58, %c0_59] : memref<8x64x256xf32, #tpu.memory_space<vmem>>, vector<1x64x256xf32>
    %169 = vector.shape_cast %168 : vector<1x64x256xf32> to vector<64x256xf32>
    %170 = vector.shape_cast %166 : vector<64x256xf32> to vector<1x64x256xf32>
    tpu.vector_store %arg3[%167, %c0_58, %c0_59], %170 {strides = array<i32>} : memref<8x64x256xf32, #tpu.memory_space<vmem>>, vector<1x64x256xf32>,
    %c6_i32 = arith.constant 6 : i32
    %171 = arith.index_cast %c6_i32 : i32 to index
    %c0_60 = arith.constant 0 : index
    %c0_61 = arith.constant 0 : index
    %172 = vector.load %arg1[%171, %c0_60, %c0_61] : memref<8x64x256xf32, #tpu.memory_space<vmem>>, vector<1x64x256xf32>
    %173 = vector.shape_cast %172 : vector<1x64x256xf32> to vector<64x256xf32>
    %cst_62 = arith.constant dense<0.000000e+00> : vector<64xf32>
    %174 = vector.multi_reduction <add>, %173, %cst_62 [1] : vector<64x256xf32> to vector<64xf32>
    %175 = vector.shape_cast %174 : vector<64xf32> to vector<64x1xf32>
    %cst_63 = arith.constant 3.906250e-03 : f32
    %176 = vector.broadcast %cst_63 : f32 to vector<64x1xf32>
    %177 = arith.mulf %175, %176 : vector<64x1xf32>
    %178 = vector.broadcast %177 : vector<64x1xf32> to vector<64x4xf32>
    %179 = arith.mulf %1, %178 : vector<64x4xf32>
    %cst_64 = arith.constant dense<0.000000e+00> : vector<4xf32>
    %180 = vector.multi_reduction <add>, %179, %cst_64 [0] : vector<64x4xf32> to vector<4xf32>
    %181 = vector.shape_cast %180 : vector<4xf32> to vector<1x4xf32>
    %cst_65 = arith.constant 0.000000e+00 : f32
    %182 = vector.broadcast %cst_65 : f32 to vector<1x4xf32>
    %183 = arith.maximumf %181, %182 : vector<1x4xf32>
    %184 = vector.broadcast %183 : vector<1x4xf32> to vector<64x4xf32>
    %185 = arith.mulf %2, %184 : vector<64x4xf32>
    %cst_66 = arith.constant dense<0.000000e+00> : vector<64xf32>
    %186 = vector.multi_reduction <add>, %185, %cst_66 [1] : vector<64x4xf32> to vector<64xf32>
    %187 = vector.shape_cast %186 : vector<64xf32> to vector<64x1xf32>
    %188 = arith.negf %187 : vector<64x1xf32>
    %189 = math.exp %188 : vector<64x1xf32>
    %cst_67 = arith.constant 1.000000e+00 : f32
    %190 = vector.broadcast %cst_67 : f32 to vector<64x1xf32>
    %191 = arith.addf %190, %189 : vector<64x1xf32>
    %192 = arith.divf %190, %191 : vector<64x1xf32>
    %193 = vector.broadcast %192 : vector<64x1xf32> to vector<64x256xf32>
    %194 = arith.mulf %173, %193 : vector<64x256xf32>
    %195 = arith.index_cast %c6_i32 : i32 to index
    %c0_68 = arith.constant 0 : index
    %c0_69 = arith.constant 0 : index
    %196 = vector.load %arg3[%195, %c0_68, %c0_69] : memref<8x64x256xf32, #tpu.memory_space<vmem>>, vector<1x64x256xf32>
    %197 = vector.shape_cast %196 : vector<1x64x256xf32> to vector<64x256xf32>
    %198 = vector.shape_cast %194 : vector<64x256xf32> to vector<1x64x256xf32>
    tpu.vector_store %arg3[%195, %c0_68, %c0_69], %198 {strides = array<i32>} : memref<8x64x256xf32, #tpu.memory_space<vmem>>, vector<1x64x256xf32>,
    %c7_i32 = arith.constant 7 : i32
    %199 = arith.index_cast %c7_i32 : i32 to index
    %c0_70 = arith.constant 0 : index
    %c0_71 = arith.constant 0 : index
    %200 = vector.load %arg1[%199, %c0_70, %c0_71] : memref<8x64x256xf32, #tpu.memory_space<vmem>>, vector<1x64x256xf32>
    %201 = vector.shape_cast %200 : vector<1x64x256xf32> to vector<64x256xf32>
    %cst_72 = arith.constant dense<0.000000e+00> : vector<64xf32>
    %202 = vector.multi_reduction <add>, %201, %cst_72 [1] : vector<64x256xf32> to vector<64xf32>
    %203 = vector.shape_cast %202 : vector<64xf32> to vector<64x1xf32>
    %cst_73 = arith.constant 3.906250e-03 : f32
    %204 = vector.broadcast %cst_73 : f32 to vector<64x1xf32>
    %205 = arith.mulf %203, %204 : vector<64x1xf32>
    %206 = vector.broadcast %205 : vector<64x1xf32> to vector<64x4xf32>
    %207 = arith.mulf %1, %206 : vector<64x4xf32>
    %cst_74 = arith.constant dense<0.000000e+00> : vector<4xf32>
    %208 = vector.multi_reduction <add>, %207, %cst_74 [0] : vector<64x4xf32> to vector<4xf32>
    %209 = vector.shape_cast %208 : vector<4xf32> to vector<1x4xf32>
    %cst_75 = arith.constant 0.000000e+00 : f32
    %210 = vector.broadcast %cst_75 : f32 to vector<1x4xf32>
    %211 = arith.maximumf %209, %210 : vector<1x4xf32>
    %212 = vector.broadcast %211 : vector<1x4xf32> to vector<64x4xf32>
    %213 = arith.mulf %2, %212 : vector<64x4xf32>
    %cst_76 = arith.constant dense<0.000000e+00> : vector<64xf32>
    %214 = vector.multi_reduction <add>, %213, %cst_76 [1] : vector<64x4xf32> to vector<64xf32>
    %215 = vector.shape_cast %214 : vector<64xf32> to vector<64x1xf32>
    %216 = arith.negf %215 : vector<64x1xf32>
    %217 = math.exp %216 : vector<64x1xf32>
    %cst_77 = arith.constant 1.000000e+00 : f32
    %218 = vector.broadcast %cst_77 : f32 to vector<64x1xf32>
    %219 = arith.addf %218, %217 : vector<64x1xf32>
    %220 = arith.divf %218, %219 : vector<64x1xf32>
    %221 = vector.broadcast %220 : vector<64x1xf32> to vector<64x256xf32>
    %222 = arith.mulf %201, %221 : vector<64x256xf32>
    %223 = arith.index_cast %c7_i32 : i32 to index
    %c0_78 = arith.constant 0 : index
    %c0_79 = arith.constant 0 : index
    %224 = vector.load %arg3[%223, %c0_78, %c0_79] : memref<8x64x256xf32, #tpu.memory_space<vmem>>, vector<1x64x256xf32>
    %225 = vector.shape_cast %224 : vector<1x64x256xf32> to vector<64x256xf32>
    %226 = vector.shape_cast %222 : vector<64x256xf32> to vector<1x64x256xf32>
    tpu.vector_store %arg3[%223, %c0_78, %c0_79], %226 {strides = array<i32>} : memref<8x64x256xf32, #tpu.memory_space<vmem>>, vector<1x64x256xf32>,
    %c8_i32 = arith.constant 8 : i32
    return
  }
  func.func @transform_0(%arg0: i32) -> (i32, i32, i32) {
    %c0_i32 = arith.constant 0 : i32
    %c0_i32_0 = arith.constant 0 : i32
    %c0_i32_1 = arith.constant 0 : i32
    return %arg0, %c0_i32, %c0_i32_0 : i32, i32, i32
  }
  func.func @transform_1(%arg0: i32) -> (i32, i32) {
    %c0_i32 = arith.constant 0 : i32
    %c0_i32_0 = arith.constant 0 : i32
    %c0_i32_1 = arith.constant 0 : i32
    return %c0_i32, %c0_i32_0 : i32, i32
  }
  func.func @transform_2(%arg0: i32) -> (i32, i32, i32) {
    %c0_i32 = arith.constant 0 : i32
    %c0_i32_0 = arith.constant 0 : i32
    %c0_i32_1 = arith.constant 0 : i32
    return %arg0, %c0_i32, %c0_i32_0 : i32, i32, i32
  }
}

</mosaic_0001>

<llo_original>
// kernel: tpu_custom_call.1
$region0: #{tpu_custom_call.1}
  #allocation0 [shape = 'u32[]', space=smem, size = 0x4, offset = 0x4, fixed_abs, tag = 'smem constant byte address 0x4 - core index']
  #allocation1 [shape = 'u32[144,128]{1,0:T(1,128)}', space=vmem, size = 0x12000, scoped, tag = 'internal scratch']
  %s0 = inlined_call_operand.hbm [shape: f32[16,64,256], index: 0, kind: input, shape index: {}]
  %s1 = inlined_call_operand.vmem [shape: f32[64,8], index: 1, kind: input, shape index: {}]
  %s2 = inlined_call_operand.hbm [shape: f32[16,64,256], index: 2, kind: output, shape index: {}]
  %s3 = sld [smem:[#allocation0]]
  $region45: #{tpu_custom_call.1} parent=0
    _
  %s5 = ssub.s32 1, %s3
  %s6 = scalar_select 0, %s5, %s3
  $region1: #{tpu_custom_call.1} parent=0
    #allocation2 [shape = 'u8[1048576]{0}', space=vmem, size = 0x100000, scoped, tag = 'input window, operand 0']
    #allocation3 [shape = 's32[2]{0}', space=sflag, size = 0x8, scoped, tag = 'scoped memory for tpu_custom_call.1']
    #allocation4 [shape = 's32[2]{0}', space=sflag, size = 0x8, scoped, tag = 'scoped memory for tpu_custom_call.1']
    #allocation5 [shape = 'u8[1048576]{0}', space=vmem, size = 0x100000, scoped, tag = 'output window, operand 0']
    %7 = vsyncpa [#allocation3], 0
    %s8 = scalar_lea.sflag [#allocation3], 1
    %9 = vsyncpa %s8, 0
    %10 = vsyncpa [#allocation4], 0
    %s11 = scalar_lea.sflag [#allocation4], 1
    %12 = vsyncpa %s11, 0
    loop: start=0, step=1, limit=4
    $region2: #{tpu_custom_call.1} parent=1 // loop_pre_header
      _
    $region3: #{tpu_custom_call.1} parent=1 // loop_header
      %s14 = sphi 0, %s18
      %p15 = scmp.ge.s32.totalorder %s14, 4
      %s24 = sphi 0, %s26
      %s27 = sphi 0, %s24
      %s28 = sphi 0, %s27
      %s44 = sphi 0, %s28
      %s48 = sphi 0, %s48
      %s50 = sphi 0, %s48
      %s51 = sphi 0, %s50
      %s65 = sphi 0, %s51
      %s71 = sphi 0, %s73
      %s74 = sphi 0, %s71
      %s75 = sphi 0, %s74
      %s91 = sphi 0, %s75
    $region4: #{tpu_custom_call.1} parent=1 // loop_header_branch
      %17 = sbr.rel (%p15) target = $region8
    $region5: #{tpu_custom_call.1} parent=1 // loop_body
      %s19 = ssub.s32 %s14, 1
      %s20 = ssub.s32 %s14, 2
      %s21 = sadd.s32 %s14, 1
      %s22 = ssub.s32 %s14, %s21
      %p23 = scmp.eq.s32.totalorder %s22, 0
      %s25 = sadd.s32 %s24, 1
      %s26 = scalar_select %p23, %s24, %s25
      %p29 = pneg %p23
      %p30 = scmp.eq.s32.totalorder %s14, 1
      %p31 = por %p29, %p30
      %p32 = scmp.ne.s32.totalorder %s24, %s27
      %p33 = scmp.eq.s32.totalorder %s14, 0
      %p34 = por %p32, %p33
      %p35 = scmp.ne.s32.totalorder %s24, %s27
      %p36 = scmp.eq.s32.totalorder %s19, 1
      %p37 = por %p35, %p36
      %p38 = scmp.ne.s32.totalorder %s27, %s28
      %p39 = scmp.eq.s32.totalorder %s19, 0
      %p40 = por %p38, %p39
      %p41 = scmp.ne.s32.totalorder %s27, %s28
      %p42 = scmp.eq.s32.totalorder %s20, 1
      %p43 = por %p41, %p42
      %p45 = scmp.ne.s32.totalorder %s28, %s44
      %p46 = scmp.eq.s32.totalorder %s20, 0
      %p47 = por %p45, %p46
      %s49 = sadd.s32 %s48, 1
      %p52 = scmp.eq.s32.totalorder %s14, 1
      %p53 = scmp.ne.s32.totalorder %s48, %s50
      %p54 = scmp.eq.s32.totalorder %s14, 0
      %p55 = por %p53, %p54
      %p56 = scmp.ne.s32.totalorder %s48, %s50
      %p57 = scmp.eq.s32.totalorder %s19, 1
      %p58 = por %p56, %p57
      %p59 = scmp.ne.s32.totalorder %s50, %s51
      %p60 = scmp.eq.s32.totalorder %s19, 0
      %p61 = por %p59, %p60
      %p62 = scmp.ne.s32.totalorder %s50, %s51
      %p63 = scmp.eq.s32.totalorder %s20, 1
      %p64 = por %p62, %p63
      %p66 = scmp.ne.s32.totalorder %s51, %s65
      %p67 = scmp.eq.s32.totalorder %s20, 0
      %p68 = por %p66, %p67
      %s69 = ssub.s32 %s14, %s21
      %p70 = scmp.eq.s32.totalorder %s69, 0
      %s72 = sadd.s32 %s71, 1
      %s73 = scalar_select %p70, %s71, %s72
      %p76 = pneg %p70
      %p77 = scmp.eq.s32.totalorder %s14, 1
      %p78 = por %p76, %p77
      %p79 = scmp.ne.s32.totalorder %s71, %s74
      %p80 = scmp.eq.s32.totalorder %s14, 0
      %p81 = por %p79, %p80
      %p82 = scmp.ne.s32.totalorder %s71, %s74
      %p83 = scmp.eq.s32.totalorder %s19, 1
      %p84 = por %p82, %p83
      %p85 = scmp.ne.s32.totalorder %s74, %s75
      %p86 = scmp.eq.s32.totalorder %s19, 0
      %p87 = por %p85, %p86
      %p88 = scmp.ne.s32.totalorder %s74, %s75
      %p89 = scmp.eq.s32.totalorder %s20, 1
      %p90 = por %p88, %p89
      %p92 = scmp.ne.s32.totalorder %s75, %s91
      %p93 = scmp.eq.s32.totalorder %s20, 0
      %p94 = por %p92, %p93
      %p95 = scmp.le.s32.totalorder 1, %s14
      %p96 = scmp.lt.s32.totalorder %s14, 3
      %p97 = pnand %p95, %p96
      %p98 = pneg %p97
      // Predicated region
      $region9: #{tpu_custom_call.1} parent=5 // pred_check
        _
      $region10: #{tpu_custom_call.1} parent=5 // pred_check_branch
        %100 = sbr.rel (%p97) target = $region12
      $region11: #{tpu_custom_call.1} parent=5 // pred_region
        %s101 = ssub.s32 %s14, 1
        // Predicated region
        $region13: #{tpu_custom_call.1} parent=11 // pred_check
          %p102 = pneg %p61
        $region14: #{tpu_custom_call.1} parent=11 // pred_check_branch
          %104 = sbr.rel (%p102) target = $region16
        $region15: #{tpu_custom_call.1} parent=11 // pred_region
          _
        $region16: #{tpu_custom_call.1} parent=11 // pred_fallthru
          _
      $region12: #{tpu_custom_call.1} parent=5 // pred_fallthru
        _
      %p105 = scmp.lt.s32.totalorder %s14, 2
      // Predicated region
      $region17: #{tpu_custom_call.1} parent=5 // pred_check
        %p106 = pneg %p105
      $region18: #{tpu_custom_call.1} parent=5 // pred_check_branch
        %108 = sbr.rel (%p106) target = $region20
      $region19: #{tpu_custom_call.1} parent=5 // pred_region
        // Predicated region
        $region21: #{tpu_custom_call.1} parent=19 // pred_check
          %p109 = pneg %p34
        $region22: #{tpu_custom_call.1} parent=19 // pred_check_branch
          %111 = sbr.rel (%p109) target = $region24
        $region23: #{tpu_custom_call.1} parent=19 // pred_region
          %s112 = sand.u32 %s24, 1
          %s113 = scalar_lea.sflag [#allocation3], %s112
          %s114 = sand.u32 %s24, 1
          %s115 = smul.addr %s114, 1024
          %s116 = scalar_lea.vmem [#allocation2], %s115
          %s117 = smul.u32 8, %s14
          %s119 = ssub.s32 16384, 16384
          %120 = vsyncadd %s113, %s119
          %s121 = smul.addr %s117, 16
          %s122 = smul.addr %s121, 128
          %s123 = scalar_lea.hbm %s0, %s122
          %s124 = sshll.u32 %s116, 4
          %s125 = int_to_ptr.vmem [resolvable:$true] %s124
          %130 = dma.hbm_to_vmem [thread:$0]  %s123, 16384, %s125, %s113, 256, 256, 16
        $region24: #{tpu_custom_call.1} parent=19 // pred_fallthru
          _
      $region20: #{tpu_custom_call.1} parent=5 // pred_fallthru
        _
      %p131 = scmp.le.s32.totalorder 1, %s14
      %p132 = scmp.lt.s32.totalorder %s14, 3
      %p133 = pnand %p131, %p132
      %p134 = pneg %p133
      // Predicated region
      $region25: #{tpu_custom_call.1} parent=5 // pred_check
        _
      $region26: #{tpu_custom_call.1} parent=5 // pred_check_branch
        %136 = sbr.rel (%p133) target = $region28
      $region27: #{tpu_custom_call.1} parent=5 // pred_region
        %s137 = ssub.s32 %s14, 1
        %s138 = sand.u32 %s27, 1
        %s139 = scalar_lea.sflag [#allocation3], %s138
        %s140 = sand.u32 %s27, 1
        %s141 = smul.addr %s140, 1024
        %s142 = scalar_lea.vmem [#allocation2], %s141
        // Predicated region
        $region29: #{tpu_custom_call.1} parent=27 // pred_check
          %p143 = pneg %p40
        $region30: #{tpu_custom_call.1} parent=27 // pred_check_branch
          %145 = sbr.rel (%p143) target = $region32
        $region31: #{tpu_custom_call.1} parent=27 // pred_region
          %146 = dma.done %s139, 16384
        $region32: #{tpu_custom_call.1} parent=27 // pred_fallthru
          _
        %s147 = sand.u32 %s27, 1
        %s148 = scalar_lea.sflag [#allocation3], %s147
        %s149 = sand.u32 %s27, 1
        %s150 = smul.addr %s149, 1024
        %s151 = scalar_lea.vmem [#allocation2], %s150
        %p152 = pneg %p40
        %p153 = pneg %p37
        %p154 = pneg %p61
        %p155 = pneg %p58
        %p156 = pneg %p87
        %p157 = pneg %p84
        %s158 = sand.u32 %s74, 1
        %s159 = scalar_lea.sflag [#allocation4], %s158
        %s160 = sand.u32 %s74, 1
        %s161 = smul.addr %s160, 1024
        %s162 = scalar_lea.vmem [#allocation5], %s161
        %s163 = smul.u32 8, %s19
        %s164 = smul.u32 8, %s19
        %v165 = vld [vmem:[%s1] sm:$0xff]
        %v166 = vld [vmem:[%s1 + $0x8] sm:$0xff]
        %v167 = vld [vmem:[%s1 + $0x10] sm:$0xff]
        %v168 = vld [vmem:[%s1 + $0x18] sm:$0xff]
        %v169 = vld [vmem:[%s1 + $0x20] sm:$0xff]
        %v170 = vld [vmem:[%s1 + $0x28] sm:$0xff]
        %v171 = vld [vmem:[%s1 + $0x30] sm:$0xff]
        %v172 = vld [vmem:[%s1 + $0x38] sm:$0xff]
        %v173 = vld [vmem:[%s142] sm:$0xff]
        %v174 = vld [vmem:[%s142 + $0x8] sm:$0xff]
        %v175 = vld [vmem:[%s142 + $0x10] sm:$0xff]
        %v176 = vld [vmem:[%s142 + $0x18] sm:$0xff]
        %v177 = vld [vmem:[%s142 + $0x20] sm:$0xff]
        %v178 = vld [vmem:[%s142 + $0x28] sm:$0xff]
        %v179 = vld [vmem:[%s142 + $0x30] sm:$0xff]
        %v180 = vld [vmem:[%s142 + $0x38] sm:$0xff]
        %v181 = vld [vmem:[%s142 + $0x40] sm:$0xff]
        %v182 = vld [vmem:[%s142 + $0x48] sm:$0xff]
        %v183 = vld [vmem:[%s142 + $0x50] sm:$0xff]
        %v184 = vld [vmem:[%s142 + $0x58] sm:$0xff]
        %v185 = vld [vmem:[%s142 + $0x60] sm:$0xff]
        %v186 = vld [vmem:[%s142 + $0x68] sm:$0xff]
        %v187 = vld [vmem:[%s142 + $0x70] sm:$0xff]
        %v188 = vld [vmem:[%s142 + $0x78] sm:$0xff]
        %v189 = vadd.f32 %v173, %v174
        %190 = vadd.xlane.f32.xlu0 %v189
        %v191 = vpop.xlane.xlu0 %190
        %v192 = vadd.f32 %v175, %v176
        %193 = vadd.xlane.f32.xlu0 %v192
        %v194 = vpop.xlane.xlu0 %193
        %v195 = vadd.f32 %v177, %v178
        %196 = vadd.xlane.f32.xlu0 %v195
        %v197 = vpop.xlane.xlu0 %196
        %v198 = vadd.f32 %v179, %v180
        %199 = vadd.xlane.f32.xlu0 %v198
        %v200 = vpop.xlane.xlu0 %199
        %v201 = vadd.f32 %v181, %v182
        %202 = vadd.xlane.f32.xlu0 %v201
        %v203 = vpop.xlane.xlu0 %202
        %v204 = vadd.f32 %v183, %v184
        %205 = vadd.xlane.f32.xlu0 %v204
        %v206 = vpop.xlane.xlu0 %205
        %v207 = vadd.f32 %v185, %v186
        %208 = vadd.xlane.f32.xlu0 %v207
        %v209 = vpop.xlane.xlu0 %208
        %v210 = vadd.f32 %v187, %v188
        %211 = vadd.xlane.f32.xlu0 %v210
        %v212 = vpop.xlane.xlu0 %211
        %v213 = vmul.f32 %v191, 0.00390625
        %v214 = vmul.f32 %v194, 0.00390625
        %v215 = vmul.f32 %v197, 0.00390625
        %v216 = vmul.f32 %v200, 0.00390625
        %v217 = vmul.f32 %v203, 0.00390625
        %v218 = vmul.f32 %v206, 0.00390625
        %v219 = vmul.f32 %v209, 0.00390625
        %v220 = vmul.f32 %v212, 0.00390625
        %v221 = vmul.f32 %v165, %v213
        %v222 = vmul.f32 %v166, %v214
        %v223 = vmul.f32 %v167, %v215
        %v224 = vmul.f32 %v168, %v216
        %v225 = vmul.f32 %v169, %v217
        %v226 = vmul.f32 %v170, %v218
        %v227 = vmul.f32 %v171, %v219
        %v228 = vmul.f32 %v172, %v220
        %vm229 = vcmask 31744
        %v230 = vsel %vm229, %v221, 0.0
        %v231 = vsel %vm229, %v222, 0.0
        %v232 = vadd.f32 %v230, %v231
        %v233 = vsel %vm229, %v223, 0.0
        %v234 = vadd.f32 %v232, %v233
        %v235 = vsel %vm229, %v224, 0.0
        %v236 = vadd.f32 %v234, %v235
        %v237 = vsel %vm229, %v225, 0.0
        %v238 = vadd.f32 %v236, %v237
        %v239 = vsel %vm229, %v226, 0.0
        %v240 = vadd.f32 %v238, %v239
        %v241 = vsel %vm229, %v227, 0.0
        %v242 = vadd.f32 %v240, %v241
        %v243 = vsel %vm229, %v228, 0.0
        %v244 = vadd.f32 %v242, %v243
        %v245 = vrot.slane %v244, 4
        %v246 = vadd.f32 %v244, %v245
        %v247 = vrot.slane %v246, 2
        %v248 = vadd.f32 %v246, %v247
        %v249 = vrot.slane %v248, 1
        %v250 = vadd.f32 %v248, %v249
        %v251 = vmax.f32 %v250, 0.0
        %253 = vrot.lane.b32.xlu0 %v251, 4
        %v254 = vpop.permute.xlu0 %253
        %v256 = vmul.f32 %v165, %v254
        %v257 = vmul.f32 %v166, %v254
        %v258 = vmul.f32 %v167, %v254
        %v259 = vmul.f32 %v168, %v254
        %v260 = vmul.f32 %v169, %v254
        %v261 = vmul.f32 %v170, %v254
        %v262 = vmul.f32 %v171, %v254
        %v263 = vmul.f32 %v172, %v254
        %272 = vrot.lane.b32.xlu0 %v256, 124
        %v273 = vpop.permute.xlu0 %272
        %274 = vrot.lane.b32.xlu0 %v257, 124
        %v275 = vpop.permute.xlu0 %274
        %276 = vrot.lane.b32.xlu0 %v258, 124
        %v277 = vpop.permute.xlu0 %276
        %278 = vrot.lane.b32.xlu0 %v259, 124
        %v279 = vpop.permute.xlu0 %278
        %280 = vrot.lane.b32.xlu0 %v260, 124
        %v281 = vpop.permute.xlu0 %280
        %282 = vrot.lane.b32.xlu0 %v261, 124
        %v283 = vpop.permute.xlu0 %282
        %284 = vrot.lane.b32.xlu0 %v262, 124
        %v285 = vpop.permute.xlu0 %284
        %286 = vrot.lane.b32.xlu0 %v263, 124
        %v287 = vpop.permute.xlu0 %286
        %v296 = vsel %vm229, %v273, 0.0
        %297 = vadd.xlane.f32.xlu0 %v296
        %v298 = vpop.xlane.xlu0 %297
        %v299 = vsel %vm229, %v275, 0.0
        %300 = vadd.xlane.f32.xlu0 %v299
        %v301 = vpop.xlane.xlu0 %300
        %v302 = vsel %vm229, %v277, 0.0
        %303 = vadd.xlane.f32.xlu0 %v302
        %v304 = vpop.xlane.xlu0 %303
        %v305 = vsel %vm229, %v279, 0.0
        %306 = vadd.xlane.f32.xlu0 %v305
        %v307 = vpop.xlane.xlu0 %306
        %v308 = vsel %vm229, %v281, 0.0
        %309 = vadd.xlane.f32.xlu0 %v308
        %v310 = vpop.xlane.xlu0 %309
        %v311 = vsel %vm229, %v283, 0.0
        %312 = vadd.xlane.f32.xlu0 %v311
        %v313 = vpop.xlane.xlu0 %312
        %v314 = vsel %vm229, %v285, 0.0
        %315 = vadd.xlane.f32.xlu0 %v314
        %v316 = vpop.xlane.xlu0 %315
        %v317 = vsel %vm229, %v287, 0.0
        %318 = vadd.xlane.f32.xlu0 %v317
        %v319 = vpop.xlane.xlu0 %318
        %v320 = vxor.u32 %v298, 2147483648
        %v321 = vxor.u32 %v301, 2147483648
        %v322 = vxor.u32 %v304, 2147483648
        %v323 = vxor.u32 %v307, 2147483648
        %v324 = vxor.u32 %v310, 2147483648
        %v325 = vxor.u32 %v313, 2147483648
        %v326 = vxor.u32 %v316, 2147483648
        %v327 = vxor.u32 %v319, 2147483648
        %v328 = vmul.f32 %v320, 1.442695
        %v329 = vpow.pop %v328
        %v330 = vmul.f32 %v321, 1.442695
        %v331 = vpow.pop %v330
        %v332 = vmul.f32 %v322, 1.442695
        %v333 = vpow.pop %v332
        %v334 = vmul.f32 %v323, 1.442695
        %v335 = vpow.pop %v334
        %v336 = vmul.f32 %v324, 1.442695
        %v337 = vpow.pop %v336
        %v338 = vmul.f32 %v325, 1.442695
        %v339 = vpow.pop %v338
        %v340 = vmul.f32 %v326, 1.442695
        %v341 = vpow.pop %v340
        %v342 = vmul.f32 %v327, 1.442695
        %v343 = vpow.pop %v342
        %v344 = vadd.f32 %v329, 1.0
        %v345 = vadd.f32 %v331, 1.0
        %v346 = vadd.f32 %v333, 1.0
        %v347 = vadd.f32 %v335, 1.0
        %v348 = vadd.f32 %v337, 1.0
        %v349 = vadd.f32 %v339, 1.0
        %v350 = vadd.f32 %v341, 1.0
        %v351 = vadd.f32 %v343, 1.0
        %v352 = vrcp.pop %v344
        %v353 = vmul.f32 1.0, %v352
        %v354 = vrcp.pop %v345
        %v355 = vmul.f32 1.0, %v354
        %v356 = vrcp.pop %v346
        %v357 = vmul.f32 1.0, %v356
        %v358 = vrcp.pop %v347
        %v359 = vmul.f32 1.0, %v358
        %v360 = vrcp.pop %v348
        %v361 = vmul.f32 1.0, %v360
        %v362 = vrcp.pop %v349
        %v363 = vmul.f32 1.0, %v362
        %v364 = vrcp.pop %v350
        %v365 = vmul.f32 1.0, %v364
        %v366 = vrcp.pop %v351
        %v367 = vmul.f32 1.0, %v366
        %v368 = vmul.f32 %v173, %v353
        %v369 = vmul.f32 %v174, %v353
        %v370 = vmul.f32 %v175, %v355
        %v371 = vmul.f32 %v176, %v355
        %v372 = vmul.f32 %v177, %v357
        %v373 = vmul.f32 %v178, %v357
        %v374 = vmul.f32 %v179, %v359
        %v375 = vmul.f32 %v180, %v359
        %v376 = vmul.f32 %v181, %v361
        %v377 = vmul.f32 %v182, %v361
        %v378 = vmul.f32 %v183, %v363
        %v379 = vmul.f32 %v184, %v363
        %v380 = vmul.f32 %v185, %v365
        %v381 = vmul.f32 %v186, %v365
        %v382 = vmul.f32 %v187, %v367
        %v383 = vmul.f32 %v188, %v367
        %384 = vst [vmem:[%s162] sm:$0xff] %v368
        %385 = vst [vmem:[%s162 + $0x8] sm:$0xff] %v369
        %386 = vst [vmem:[%s162 + $0x10] sm:$0xff] %v370
        %387 = vst [vmem:[%s162 + $0x18] sm:$0xff] %v371
        %388 = vst [vmem:[%s162 + $0x20] sm:$0xff] %v372
        %389 = vst [vmem:[%s162 + $0x28] sm:$0xff] %v373
        %390 = vst [vmem:[%s162 + $0x30] sm:$0xff] %v374
        %391 = vst [vmem:[%s162 + $0x38] sm:$0xff] %v375
        %392 = vst [vmem:[%s162 + $0x40] sm:$0xff] %v376
        %393 = vst [vmem:[%s162 + $0x48] sm:$0xff] %v377
        %394 = vst [vmem:[%s162 + $0x50] sm:$0xff] %v378
        %395 = vst [vmem:[%s162 + $0x58] sm:$0xff] %v379
        %396 = vst [vmem:[%s162 + $0x60] sm:$0xff] %v380
        %397 = vst [vmem:[%s162 + $0x68] sm:$0xff] %v381
        %398 = vst [vmem:[%s162 + $0x70] sm:$0xff] %v382
        %399 = vst [vmem:[%s162 + $0x78] sm:$0xff] %v383
        %s400 = scalar_lea.vmem %s142, 128 [#allocation2]
        %v401 = vld [vmem:[%s400] sm:$0xff]
        %v402 = vld [vmem:[%s400 + $0x8] sm:$0xff]
        %v403 = vld [vmem:[%s400 + $0x10] sm:$0xff]
        %v404 = vld [vmem:[%s400 + $0x18] sm:$0xff]
        %v405 = vld [vmem:[%s400 + $0x20] sm:$0xff]
        %v406 = vld [vmem:[%s400 + $0x28] sm:$0xff]
        %v407 = vld [vmem:[%s400 + $0x30] sm:$0xff]
        %v408 = vld [vmem:[%s400 + $0x38] sm:$0xff]
        %v409 = vld [vmem:[%s400 + $0x40] sm:$0xff]
        %v410 = vld [vmem:[%s400 + $0x48] sm:$0xff]
        %v411 = vld [vmem:[%s400 + $0x50] sm:$0xff]
        %v412 = vld [vmem:[%s400 + $0x58] sm:$0xff]
        %v413 = vld [vmem:[%s400 + $0x60] sm:$0xff]
        %v414 = vld [vmem:[%s400 + $0x68] sm:$0xff]
        %v415 = vld [vmem:[%s400 + $0x70] sm:$0xff]
        %v416 = vld [vmem:[%s400 + $0x78] sm:$0xff]
        %v417 = vadd.f32 %v401, %v402
        %418 = vadd.xlane.f32.xlu0 %v417
        %v419 = vpop.xlane.xlu0 %418
        %v420 = vadd.f32 %v403, %v404
        %421 = vadd.xlane.f32.xlu0 %v420
        %v422 = vpop.xlane.xlu0 %421
        %v423 = vadd.f32 %v405, %v406
        %424 = vadd.xlane.f32.xlu0 %v423
        %v425 = vpop.xlane.xlu0 %424
        %v426 = vadd.f32 %v407, %v408
        %427 = vadd.xlane.f32.xlu0 %v426
        %v428 = vpop.xlane.xlu0 %427
        %v429 = vadd.f32 %v409, %v410
        %430 = vadd.xlane.f32.xlu0 %v429
        %v431 = vpop.xlane.xlu0 %430
        %v432 = vadd.f32 %v411, %v412
        %433 = vadd.xlane.f32.xlu0 %v432
        %v434 = vpop.xlane.xlu0 %433
        %v435 = vadd.f32 %v413, %v414
        %436 = vadd.xlane.f32.xlu0 %v435
        %v437 = vpop.xlane.xlu0 %436
        %v438 = vadd.f32 %v415, %v416
        %439 = vadd.xlane.f32.xlu0 %v438
        %v440 = vpop.xlane.xlu0 %439
        %v441 = vmul.f32 %v419, 0.00390625
        %v442 = vmul.f32 %v422, 0.00390625
        %v443 = vmul.f32 %v425, 0.00390625
        %v444 = vmul.f32 %v428, 0.00390625
        %v445 = vmul.f32 %v431, 0.00390625
        %v446 = vmul.f32 %v434, 0.00390625
        %v447 = vmul.f32 %v437, 0.00390625
        %v448 = vmul.f32 %v440, 0.00390625
        %v449 = vmul.f32 %v165, %v441
        %v450 = vmul.f32 %v166, %v442
        %v451 = vmul.f32 %v167, %v443
        %v452 = vmul.f32 %v168, %v444
        %v453 = vmul.f32 %v169, %v445
        %v454 = vmul.f32 %v170, %v446
        %v455 = vmul.f32 %v171, %v447
        %v456 = vmul.f32 %v172, %v448
        %v457 = vsel %vm229, %v449, 0.0
        %v458 = vsel %vm229, %v450, 0.0
        %v459 = vadd.f32 %v457, %v458
        %v460 = vsel %vm229, %v451, 0.0
        %v461 = vadd.f32 %v459, %v460
        %v462 = vsel %vm229, %v452, 0.0
        %v463 = vadd.f32 %v461, %v462
        %v464 = vsel %vm229, %v453, 0.0
        %v465 = vadd.f32 %v463, %v464
        %v466 = vsel %vm229, %v454, 0.0
        %v467 = vadd.f32 %v465, %v466
        %v468 = vsel %vm229, %v455, 0.0
        %v469 = vadd.f32 %v467, %v468
        %v470 = vsel %vm229, %v456, 0.0
        %v471 = vadd.f32 %v469, %v470
        %v472 = vrot.slane %v471, 4
        %v473 = vadd.f32 %v471, %v472
        %v474 = vrot.slane %v473, 2
        %v475 = vadd.f32 %v473, %v474
        %v476 = vrot.slane %v475, 1
        %v477 = vadd.f32 %v475, %v476
        %v478 = vmax.f32 %v477, 0.0
        %480 = vrot.lane.b32.xlu0 %v478, 4
        %v481 = vpop.permute.xlu0 %480
        %v483 = vmul.f32 %v165, %v481
        %v484 = vmul.f32 %v166, %v481
        %v485 = vmul.f32 %v167, %v481
        %v486 = vmul.f32 %v168, %v481
        %v487 = vmul.f32 %v169, %v481
        %v488 = vmul.f32 %v170, %v481
        %v489 = vmul.f32 %v171, %v481
        %v490 = vmul.f32 %v172, %v481
        %499 = vrot.lane.b32.xlu0 %v483, 124
        %v500 = vpop.permute.xlu0 %499
        %501 = vrot.lane.b32.xlu0 %v484, 124
        %v502 = vpop.permute.xlu0 %501
        %503 = vrot.lane.b32.xlu0 %v485, 124
        %v504 = vpop.permute.xlu0 %503
        %505 = vrot.lane.b32.xlu0 %v486, 124
        %v506 = vpop.permute.xlu0 %505
        %507 = vrot.lane.b32.xlu0 %v487, 124
        %v508 = vpop.permute.xlu0 %507
        %509 = vrot.lane.b32.xlu0 %v488, 124
        %v510 = vpop.permute.xlu0 %509
        %511 = vrot.lane.b32.xlu0 %v489, 124
        %v512 = vpop.permute.xlu0 %511
        %513 = vrot.lane.b32.xlu0 %v490, 124
        %v514 = vpop.permute.xlu0 %513
        %v523 = vsel %vm229, %v500, 0.0
        %524 = vadd.xlane.f32.xlu0 %v523
        %v525 = vpop.xlane.xlu0 %524
        %v526 = vsel %vm229, %v502, 0.0
        %527 = vadd.xlane.f32.xlu0 %v526
        %v528 = vpop.xlane.xlu0 %527
        %v529 = vsel %vm229, %v504, 0.0
        %530 = vadd.xlane.f32.xlu0 %v529
        %v531 = vpop.xlane.xlu0 %530
        %v532 = vsel %vm229, %v506, 0.0
        %533 = vadd.xlane.f32.xlu0 %v532
        %v534 = vpop.xlane.xlu0 %533
        %v535 = vsel %vm229, %v508, 0.0
        %536 = vadd.xlane.f32.xlu0 %v535
        %v537 = vpop.xlane.xlu0 %536
        %v538 = vsel %vm229, %v510, 0.0
        %539 = vadd.xlane.f32.xlu0 %v538
        %v540 = vpop.xlane.xlu0 %539
        %v541 = vsel %vm229, %v512, 0.0
        %542 = vadd.xlane.f32.xlu0 %v541
        %v543 = vpop.xlane.xlu0 %542
        %v544 = vsel %vm229, %v514, 0.0
        %545 = vadd.xlane.f32.xlu0 %v544
        %v546 = vpop.xlane.xlu0 %545
        %v547 = vxor.u32 %v525, 2147483648
        %v548 = vxor.u32 %v528, 2147483648
        %v549 = vxor.u32 %v531, 2147483648
        %v550 = vxor.u32 %v534, 2147483648
        %v551 = vxor.u32 %v537, 2147483648
        %v552 = vxor.u32 %v540, 2147483648
        %v553 = vxor.u32 %v543, 2147483648
        %v554 = vxor.u32 %v546, 2147483648
        %v555 = vmul.f32 %v547, 1.442695
        %v556 = vpow.pop %v555
        %v557 = vmul.f32 %v548, 1.442695
        %v558 = vpow.pop %v557
        %v559 = vmul.f32 %v549, 1.442695
        %v560 = vpow.pop %v559
        %v561 = vmul.f32 %v550, 1.442695
        %v562 = vpow.pop %v561
        %v563 = vmul.f32 %v551, 1.442695
        %v564 = vpow.pop %v563
        %v565 = vmul.f32 %v552, 1.442695
        %v566 = vpow.pop %v565
        %v567 = vmul.f32 %v553, 1.442695
        %v568 = vpow.pop %v567
        %v569 = vmul.f32 %v554, 1.442695
        %v570 = vpow.pop %v569
        %v571 = vadd.f32 %v556, 1.0
        %v572 = vadd.f32 %v558, 1.0
        %v573 = vadd.f32 %v560, 1.0
        %v574 = vadd.f32 %v562, 1.0
        %v575 = vadd.f32 %v564, 1.0
        %v576 = vadd.f32 %v566, 1.0
        %v577 = vadd.f32 %v568, 1.0
        %v578 = vadd.f32 %v570, 1.0
        %v579 = vrcp.pop %v571
        %v580 = vmul.f32 1.0, %v579
        %v581 = vrcp.pop %v572
        %v582 = vmul.f32 1.0, %v581
        %v583 = vrcp.pop %v573
        %v584 = vmul.f32 1.0, %v583
        %v585 = vrcp.pop %v574
        %v586 = vmul.f32 1.0, %v585
        %v587 = vrcp.pop %v575
        %v588 = vmul.f32 1.0, %v587
        %v589 = vrcp.pop %v576
        %v590 = vmul.f32 1.0, %v589
        %v591 = vrcp.pop %v577
        %v592 = vmul.f32 1.0, %v591
        %v593 = vrcp.pop %v578
        %v594 = vmul.f32 1.0, %v593
        %v595 = vmul.f32 %v401, %v580
        %v596 = vmul.f32 %v402, %v580
        %v597 = vmul.f32 %v403, %v582
        %v598 = vmul.f32 %v404, %v582
        %v599 = vmul.f32 %v405, %v584
        %v600 = vmul.f32 %v406, %v584
        %v601 = vmul.f32 %v407, %v586
        %v602 = vmul.f32 %v408, %v586
        %v603 = vmul.f32 %v409, %v588
        %v604 = vmul.f32 %v410, %v588
        %v605 = vmul.f32 %v411, %v590
        %v606 = vmul.f32 %v412, %v590
        %v607 = vmul.f32 %v413, %v592
        %v608 = vmul.f32 %v414, %v592
        %v609 = vmul.f32 %v415, %v594
        %v610 = vmul.f32 %v416, %v594
        %s611 = scalar_lea.vmem %s162, 128 [#allocation5]
        %612 = vst [vmem:[%s611] sm:$0xff] %v595
        %613 = vst [vmem:[%s611 + $0x8] sm:$0xff] %v596
        %614 = vst [vmem:[%s611 + $0x10] sm:$0xff] %v597
        %615 = vst [vmem:[%s611 + $0x18] sm:$0xff] %v598
        %616 = vst [vmem:[%s611 + $0x20] sm:$0xff] %v599
        %617 = vst [vmem:[%s611 + $0x28] sm:$0xff] %v600
        %618 = vst [vmem:[%s611 + $0x30] sm:$0xff] %v601
        %619 = vst [vmem:[%s611 + $0x38] sm:$0xff] %v602
        %620 = vst [vmem:[%s611 + $0x40] sm:$0xff] %v603
        %621 = vst [vmem:[%s611 + $0x48] sm:$0xff] %v604
        %622 = vst [vmem:[%s611 + $0x50] sm:$0xff] %v605
        %623 = vst [vmem:[%s611 + $0x58] sm:$0xff] %v606
        %624 = vst [vmem:[%s611 + $0x60] sm:$0xff] %v607
        %625 = vst [vmem:[%s611 + $0x68] sm:$0xff] %v608
        %626 = vst [vmem:[%s611 + $0x70] sm:$0xff] %v609
        %627 = vst [vmem:[%s611 + $0x78] sm:$0xff] %v610
        %s628 = scalar_lea.vmem %s142, 256 [#allocation2]
        %v629 = vld [vmem:[%s628] sm:$0xff]
        %v630 = vld [vmem:[%s628 + $0x8] sm:$0xff]
        %v631 = vld [vmem:[%s628 + $0x10] sm:$0xff]
        %v632 = vld [vmem:[%s628 + $0x18] sm:$0xff]
        %v633 = vld [vmem:[%s628 + $0x20] sm:$0xff]
        %v634 = vld [vmem:[%s628 + $0x28] sm:$0xff]
        %v635 = vld [vmem:[%s628 + $0x30] sm:$0xff]
        %v636 = vld [vmem:[%s628 + $0x38] sm:$0xff]
        %v637 = vld [vmem:[%s628 + $0x40] sm:$0xff]
        %v638 = vld [vmem:[%s628 + $0x48] sm:$0xff]
        %v639 = vld [vmem:[%s628 + $0x50] sm:$0xff]
        %v640 = vld [vmem:[%s628 + $0x58] sm:$0xff]
        %v641 = vld [vmem:[%s628 + $0x60] sm:$0xff]
        %v642 = vld [vmem:[%s628 + $0x68] sm:$0xff]
        %v643 = vld [vmem:[%s628 + $0x70] sm:$0xff]
        %v644 = vld [vmem:[%s628 + $0x78] sm:$0xff]
        %v645 = vadd.f32 %v629, %v630
        %646 = vadd.xlane.f32.xlu0 %v645
        %v647 = vpop.xlane.xlu0 %646
        %v648 = vadd.f32 %v631, %v632
        %649 = vadd.xlane.f32.xlu0 %v648
        %v650 = vpop.xlane.xlu0 %649
        %v651 = vadd.f32 %v633, %v634
        %652 = vadd.xlane.f32.xlu0 %v651
        %v653 = vpop.xlane.xlu0 %652
        %v654 = vadd.f32 %v635, %v636
        %655 = vadd.xlane.f32.xlu0 %v654
        %v656 = vpop.xlane.xlu0 %655
        %v657 = vadd.f32 %v637, %v638
        %658 = vadd.xlane.f32.xlu0 %v657
        %v659 = vpop.xlane.xlu0 %658
        %v660 = vadd.f32 %v639, %v640
        %661 = vadd.xlane.f32.xlu0 %v660
        %v662 = vpop.xlane.xlu0 %661
        %v663 = vadd.f32 %v641, %v642
        %664 = vadd.xlane.f32.xlu0 %v663
        %v665 = vpop.xlane.xlu0 %664
        %v666 = vadd.f32 %v643, %v644
        %667 = vadd.xlane.f32.xlu0 %v666
        %v668 = vpop.xlane.xlu0 %667
        %v669 = vmul.f32 %v647, 0.00390625
        %v670 = vmul.f32 %v650, 0.00390625
        %v671 = vmul.f32 %v653, 0.00390625
        %v672 = vmul.f32 %v656, 0.00390625
        %v673 = vmul.f32 %v659, 0.00390625
        %v674 = vmul.f32 %v662, 0.00390625
        %v675 = vmul.f32 %v665, 0.00390625
        %v676 = vmul.f32 %v668, 0.00390625
        %v677 = vmul.f32 %v165, %v669
        %v678 = vmul.f32 %v166, %v670
        %v679 = vmul.f32 %v167, %v671
        %v680 = vmul.f32 %v168, %v672
        %v681 = vmul.f32 %v169, %v673
        %v682 = vmul.f32 %v170, %v674
        %v683 = vmul.f32 %v171, %v675
        %v684 = vmul.f32 %v172, %v676
        %v685 = vsel %vm229, %v677, 0.0
        %v686 = vsel %vm229, %v678, 0.0
        %v687 = vadd.f32 %v685, %v686
        %v688 = vsel %vm229, %v679, 0.0
        %v689 = vadd.f32 %v687, %v688
        %v690 = vsel %vm229, %v680, 0.0
        %v691 = vadd.f32 %v689, %v690
        %v692 = vsel %vm229, %v681, 0.0
        %v693 = vadd.f32 %v691, %v692
        %v694 = vsel %vm229, %v682, 0.0
        %v695 = vadd.f32 %v693, %v694
        %v696 = vsel %vm229, %v683, 0.0
        %v697 = vadd.f32 %v695, %v696
        %v698 = vsel %vm229, %v684, 0.0
        %v699 = vadd.f32 %v697, %v698
        %v700 = vrot.slane %v699, 4
        %v701 = vadd.f32 %v699, %v700
        %v702 = vrot.slane %v701, 2
        %v703 = vadd.f32 %v701, %v702
        %v704 = vrot.slane %v703, 1
        %v705 = vadd.f32 %v703, %v704
        %v706 = vmax.f32 %v705, 0.0
        %708 = vrot.lane.b32.xlu0 %v706, 4
        %v709 = vpop.permute.xlu0 %708
        %v711 = vmul.f32 %v165, %v709
        %v712 = vmul.f32 %v166, %v709
        %v713 = vmul.f32 %v167, %v709
        %v714 = vmul.f32 %v168, %v709
        %v715 = vmul.f32 %v169, %v709
        %v716 = vmul.f32 %v170, %v709
        %v717 = vmul.f32 %v171, %v709
        %v718 = vmul.f32 %v172, %v709
        %727 = vrot.lane.b32.xlu0 %v711, 124
        %v728 = vpop.permute.xlu0 %727
        %729 = vrot.lane.b32.xlu0 %v712, 124
        %v730 = vpop.permute.xlu0 %729
        %731 = vrot.lane.b32.xlu0 %v713, 124
        %v732 = vpop.permute.xlu0 %731
        %733 = vrot.lane.b32.xlu0 %v714, 124
        %v734 = vpop.permute.xlu0 %733
        %735 = vrot.lane.b32.xlu0 %v715, 124
        %v736 = vpop.permute.xlu0 %735
        %737 = vrot.lane.b32.xlu0 %v716, 124
        %v738 = vpop.permute.xlu0 %737
        %739 = vrot.lane.b32.xlu0 %v717, 124
        %v740 = vpop.permute.xlu0 %739
        %741 = vrot.lane.b32.xlu0 %v718, 124
        %v742 = vpop.permute.xlu0 %741
        %v751 = vsel %vm229, %v728, 0.0
        %752 = vadd.xlane.f32.xlu0 %v751
        %v753 = vpop.xlane.xlu0 %752
        %v754 = vsel %vm229, %v730, 0.0
        %755 = vadd.xlane.f32.xlu0 %v754
        %v756 = vpop.xlane.xlu0 %755
        %v757 = vsel %vm229, %v732, 0.0
        %758 = vadd.xlane.f32.xlu0 %v757
        %v759 = vpop.xlane.xlu0 %758
        %v760 = vsel %vm229, %v734, 0.0
        %761 = vadd.xlane.f32.xlu0 %v760
        %v762 = vpop.xlane.xlu0 %761
        %v763 = vsel %vm229, %v736, 0.0
        %764 = vadd.xlane.f32.xlu0 %v763
        %v765 = vpop.xlane.xlu0 %764
        %v766 = vsel %vm229, %v738, 0.0
        %767 = vadd.xlane.f32.xlu0 %v766
        %v768 = vpop.xlane.xlu0 %767
        %v769 = vsel %vm229, %v740, 0.0
        %770 = vadd.xlane.f32.xlu0 %v769
        %v771 = vpop.xlane.xlu0 %770
        %v772 = vsel %vm229, %v742, 0.0
        %773 = vadd.xlane.f32.xlu0 %v772
        %v774 = vpop.xlane.xlu0 %773
        %v775 = vxor.u32 %v753, 2147483648
        %v776 = vxor.u32 %v756, 2147483648
        %v777 = vxor.u32 %v759, 2147483648
        %v778 = vxor.u32 %v762, 2147483648
        %v779 = vxor.u32 %v765, 2147483648
        %v780 = vxor.u32 %v768, 2147483648
        %v781 = vxor.u32 %v771, 2147483648
        %v782 = vxor.u32 %v774, 2147483648
        %v783 = vmul.f32 %v775, 1.442695
        %v784 = vpow.pop %v783
        %v785 = vmul.f32 %v776, 1.442695
        %v786 = vpow.pop %v785
        %v787 = vmul.f32 %v777, 1.442695
        %v788 = vpow.pop %v787
        %v789 = vmul.f32 %v778, 1.442695
        %v790 = vpow.pop %v789
        %v791 = vmul.f32 %v779, 1.442695
        %v792 = vpow.pop %v791
        %v793 = vmul.f32 %v780, 1.442695
        %v794 = vpow.pop %v793
        %v795 = vmul.f32 %v781, 1.442695
        %v796 = vpow.pop %v795
        %v797 = vmul.f32 %v782, 1.442695
        %v798 = vpow.pop %v797
        %v799 = vadd.f32 %v784, 1.0
        %v800 = vadd.f32 %v786, 1.0
        %v801 = vadd.f32 %v788, 1.0
        %v802 = vadd.f32 %v790, 1.0
        %v803 = vadd.f32 %v792, 1.0
        %v804 = vadd.f32 %v794, 1.0
        %v805 = vadd.f32 %v796, 1.0
        %v806 = vadd.f32 %v798, 1.0
        %v807 = vrcp.pop %v799
        %v808 = vmul.f32 1.0, %v807
        %v809 = vrcp.pop %v800
        %v810 = vmul.f32 1.0, %v809
        %v811 = vrcp.pop %v801
        %v812 = vmul.f32 1.0, %v811
        %v813 = vrcp.pop %v802
        %v814 = vmul.f32 1.0, %v813
        %v815 = vrcp.pop %v803
        %v816 = vmul.f32 1.0, %v815
        %v817 = vrcp.pop %v804
        %v818 = vmul.f32 1.0, %v817
        %v819 = vrcp.pop %v805
        %v820 = vmul.f32 1.0, %v819
        %v821 = vrcp.pop %v806
        %v822 = vmul.f32 1.0, %v821
        %v823 = vmul.f32 %v629, %v808
        %v824 = vmul.f32 %v630, %v808
        %v825 = vmul.f32 %v631, %v810
        %v826 = vmul.f32 %v632, %v810
        %v827 = vmul.f32 %v633, %v812
        %v828 = vmul.f32 %v634, %v812
        %v829 = vmul.f32 %v635, %v814
        %v830 = vmul.f32 %v636, %v814
        %v831 = vmul.f32 %v637, %v816
        %v832 = vmul.f32 %v638, %v816
        %v833 = vmul.f32 %v639, %v818
        %v834 = vmul.f32 %v640, %v818
        %v835 = vmul.f32 %v641, %v820
        %v836 = vmul.f32 %v642, %v820
        %v837 = vmul.f32 %v643, %v822
        %v838 = vmul.f32 %v644, %v822
        %s839 = scalar_lea.vmem %s162, 256 [#allocation5]
        %840 = vst [vmem:[%s839] sm:$0xff] %v823
        %841 = vst [vmem:[%s839 + $0x8] sm:$0xff] %v824
        %842 = vst [vmem:[%s839 + $0x10] sm:$0xff] %v825
        %843 = vst [vmem:[%s839 + $0x18] sm:$0xff] %v826
        %844 = vst [vmem:[%s839 + $0x20] sm:$0xff] %v827
        %845 = vst [vmem:[%s839 + $0x28] sm:$0xff] %v828
        %846 = vst [vmem:[%s839 + $0x30] sm:$0xff] %v829
        %847 = vst [vmem:[%s839 + $0x38] sm:$0xff] %v830
        %848 = vst [vmem:[%s839 + $0x40] sm:$0xff] %v831
        %849 = vst [vmem:[%s839 + $0x48] sm:$0xff] %v832
        %850 = vst [vmem:[%s839 + $0x50] sm:$0xff] %v833
        %851 = vst [vmem:[%s839 + $0x58] sm:$0xff] %v834
        %852 = vst [vmem:[%s839 + $0x60] sm:$0xff] %v835
        %853 = vst [vmem:[%s839 + $0x68] sm:$0xff] %v836
        %854 = vst [vmem:[%s839 + $0x70] sm:$0xff] %v837
        %855 = vst [vmem:[%s839 + $0x78] sm:$0xff] %v838
        %s856 = scalar_lea.vmem %s142, 384 [#allocation2]
        %v857 = vld [vmem:[%s856] sm:$0xff]
        %v858 = vld [vmem:[%s856 + $0x8] sm:$0xff]
        %v859 = vld [vmem:[%s856 + $0x10] sm:$0xff]
        %v860 = vld [vmem:[%s856 + $0x18] sm:$0xff]
        %v861 = vld [vmem:[%s856 + $0x20] sm:$0xff]
        %v862 = vld [vmem:[%s856 + $0x28] sm:$0xff]
        %v863 = vld [vmem:[%s856 + $0x30] sm:$0xff]
        %v864 = vld [vmem:[%s856 + $0x38] sm:$0xff]
        %v865 = vld [vmem:[%s856 + $0x40] sm:$0xff]
        %v866 = vld [vmem:[%s856 + $0x48] sm:$0xff]
        %v867 = vld [vmem:[%s856 + $0x50] sm:$0xff]
        %v868 = vld [vmem:[%s856 + $0x58] sm:$0xff]
        %v869 = vld [vmem:[%s856 + $0x60] sm:$0xff]
        %v870 = vld [vmem:[%s856 + $0x68] sm:$0xff]
        %v871 = vld [vmem:[%s856 + $0x70] sm:$0xff]
        %v872 = vld [vmem:[%s856 + $0x78] sm:$0xff]
        %v873 = vadd.f32 %v857, %v858
        %874 = vadd.xlane.f32.xlu0 %v873
        %v875 = vpop.xlane.xlu0 %874
        %v876 = vadd.f32 %v859, %v860
        %877 = vadd.xlane.f32.xlu0 %v876
        %v878 = vpop.xlane.xlu0 %877
        %v879 = vadd.f32 %v861, %v862
        %880 = vadd.xlane.f32.xlu0 %v879
        %v881 = vpop.xlane.xlu0 %880
        %v882 = vadd.f32 %v863, %v864
        %883 = vadd.xlane.f32.xlu0 %v882
        %v884 = vpop.xlane.xlu0 %883
        %v885 = vadd.f32 %v865, %v866
        %886 = vadd.xlane.f32.xlu0 %v885
        %v887 = vpop.xlane.xlu0 %886
        %v888 = vadd.f32 %v867, %v868
        %889 = vadd.xlane.f32.xlu0 %v888
        %v890 = vpop.xlane.xlu0 %889
        %v891 = vadd.f32 %v869, %v870
        %892 = vadd.xlane.f32.xlu0 %v891
        %v893 = vpop.xlane.xlu0 %892
        %v894 = vadd.f32 %v871, %v872
        %895 = vadd.xlane.f32.xlu0 %v894
        %v896 = vpop.xlane.xlu0 %895
        %v897 = vmul.f32 %v875, 0.00390625
        %v898 = vmul.f32 %v878, 0.00390625
        %v899 = vmul.f32 %v881, 0.00390625
        %v900 = vmul.f32 %v884, 0.00390625
        %v901 = vmul.f32 %v887, 0.00390625
        %v902 = vmul.f32 %v890, 0.00390625
        %v903 = vmul.f32 %v893, 0.00390625
        %v904 = vmul.f32 %v896, 0.00390625
        %v905 = vmul.f32 %v165, %v897
        %v906 = vmul.f32 %v166, %v898
        %v907 = vmul.f32 %v167, %v899
        %v908 = vmul.f32 %v168, %v900
        %v909 = vmul.f32 %v169, %v901
        %v910 = vmul.f32 %v170, %v902
        %v911 = vmul.f32 %v171, %v903
        %v912 = vmul.f32 %v172, %v904
        %v913 = vsel %vm229, %v905, 0.0
        %v914 = vsel %vm229, %v906, 0.0
        %v915 = vadd.f32 %v913, %v914
        %v916 = vsel %vm229, %v907, 0.0
        %v917 = vadd.f32 %v915, %v916
        %v918 = vsel %vm229, %v908, 0.0
        %v919 = vadd.f32 %v917, %v918
        %v920 = vsel %vm229, %v909, 0.0
        %v921 = vadd.f32 %v919, %v920
        %v922 = vsel %vm229, %v910, 0.0
        %v923 = vadd.f32 %v921, %v922
        %v924 = vsel %vm229, %v911, 0.0
        %v925 = vadd.f32 %v923, %v924
        %v926 = vsel %vm229, %v912, 0.0
        %v927 = vadd.f32 %v925, %v926
        %v928 = vrot.slane %v927, 4
        %v929 = vadd.f32 %v927, %v928
        %v930 = vrot.slane %v929, 2
        %v931 = vadd.f32 %v929, %v930
        %v932 = vrot.slane %v931, 1
        %v933 = vadd.f32 %v931, %v932
        %v934 = vmax.f32 %v933, 0.0
        %936 = vrot.lane.b32.xlu0 %v934, 4
        %v937 = vpop.permute.xlu0 %936
        %v939 = vmul.f32 %v165, %v937
        %v940 = vmul.f32 %v166, %v937
        %v941 = vmul.f32 %v167, %v937
        %v942 = vmul.f32 %v168, %v937
        %v943 = vmul.f32 %v169, %v937
        %v944 = vmul.f32 %v170, %v937
        %v945 = vmul.f32 %v171, %v937
        %v946 = vmul.f32 %v172, %v937
        %955 = vrot.lane.b32.xlu0 %v939, 124
        %v956 = vpop.permute.xlu0 %955
        %957 = vrot.lane.b32.xlu0 %v940, 124
        %v958 = vpop.permute.xlu0 %957
        %959 = vrot.lane.b32.xlu0 %v941, 124
        %v960 = vpop.permute.xlu0 %959
        %961 = vrot.lane.b32.xlu0 %v942, 124
        %v962 = vpop.permute.xlu0 %961
        %963 = vrot.lane.b32.xlu0 %v943, 124
        %v964 = vpop.permute.xlu0 %963
        %965 = vrot.lane.b32.xlu0 %v944, 124
        %v966 = vpop.permute.xlu0 %965
        %967 = vrot.lane.b32.xlu0 %v945, 124
        %v968 = vpop.permute.xlu0 %967
        %969 = vrot.lane.b32.xlu0 %v946, 124
        %v970 = vpop.permute.xlu0 %969
        %v979 = vsel %vm229, %v956, 0.0
        %980 = vadd.xlane.f32.xlu0 %v979
        %v981 = vpop.xlane.xlu0 %980
        %v982 = vsel %vm229, %v958, 0.0
        %983 = vadd.xlane.f32.xlu0 %v982
        %v984 = vpop.xlane.xlu0 %983
        %v985 = vsel %vm229, %v960, 0.0
        %986 = vadd.xlane.f32.xlu0 %v985
        %v987 = vpop.xlane.xlu0 %986
        %v988 = vsel %vm229, %v962, 0.0
        %989 = vadd.xlane.f32.xlu0 %v988
        %v990 = vpop.xlane.xlu0 %989
        %v991 = vsel %vm229, %v964, 0.0
        %992 = vadd.xlane.f32.xlu0 %v991
        %v993 = vpop.xlane.xlu0 %992
        %v994 = vsel %vm229, %v966, 0.0
        %995 = vadd.xlane.f32.xlu0 %v994
        %v996 = vpop.xlane.xlu0 %995
        %v997 = vsel %vm229, %v968, 0.0
        %998 = vadd.xlane.f32.xlu0 %v997
        %v999 = vpop.xlane.xlu0 %998
        %v1000 = vsel %vm229, %v970, 0.0
        %1001 = vadd.xlane.f32.xlu0 %v1000
        %v1002 = vpop.xlane.xlu0 %1001
        %v1003 = vxor.u32 %v981, 2147483648
        %v1004 = vxor.u32 %v984, 2147483648
        %v1005 = vxor.u32 %v987, 2147483648
        %v1006 = vxor.u32 %v990, 2147483648
        %v1007 = vxor.u32 %v993, 2147483648
        %v1008 = vxor.u32 %v996, 2147483648
        %v1009 = vxor.u32 %v999, 2147483648
        %v1010 = vxor.u32 %v1002, 2147483648
        %v1011 = vmul.f32 %v1003, 1.442695
        %v1012 = vpow.pop %v1011
        %v1013 = vmul.f32 %v1004, 1.442695
        %v1014 = vpow.pop %v1013
        %v1015 = vmul.f32 %v1005, 1.442695
        %v1016 = vpow.pop %v1015
        %v1017 = vmul.f32 %v1006, 1.442695
        %v1018 = vpow.pop %v1017
        %v1019 = vmul.f32 %v1007, 1.442695
        %v1020 = vpow.pop %v1019
        %v1021 = vmul.f32 %v1008, 1.442695
        %v1022 = vpow.pop %v1021
        %v1023 = vmul.f32 %v1009, 1.442695
        %v1024 = vpow.pop %v1023
        %v1025 = vmul.f32 %v1010, 1.442695
        %v1026 = vpow.pop %v1025
        %v1027 = vadd.f32 %v1012, 1.0
        %v1028 = vadd.f32 %v1014, 1.0
        %v1029 = vadd.f32 %v1016, 1.0
        %v1030 = vadd.f32 %v1018, 1.0
        %v1031 = vadd.f32 %v1020, 1.0
        %v1032 = vadd.f32 %v1022, 1.0
        %v1033 = vadd.f32 %v1024, 1.0
        %v1034 = vadd.f32 %v1026, 1.0
        %v1035 = vrcp.pop %v1027
        %v1036 = vmul.f32 1.0, %v1035
        %v1037 = vrcp.pop %v1028
        %v1038 = vmul.f32 1.0, %v1037
        %v1039 = vrcp.pop %v1029
        %v1040 = vmul.f32 1.0, %v1039
        %v1041 = vrcp.pop %v1030
        %v1042 = vmul.f32 1.0, %v1041
        %v1043 = vrcp.pop %v1031
        %v1044 = vmul.f32 1.0, %v1043
        %v1045 = vrcp.pop %v1032
        %v1046 = vmul.f32 1.0, %v1045
        %v1047 = vrcp.pop %v1033
        %v1048 = vmul.f32 1.0, %v1047
        %v1049 = vrcp.pop %v1034
        %v1050 = vmul.f32 1.0, %v1049
        %v1051 = vmul.f32 %v857, %v1036
        %v1052 = vmul.f32 %v858, %v1036
        %v1053 = vmul.f32 %v859, %v1038
        %v1054 = vmul.f32 %v860, %v1038
        %v1055 = vmul.f32 %v861, %v1040
        %v1056 = vmul.f32 %v862, %v1040
        %v1057 = vmul.f32 %v863, %v1042
        %v1058 = vmul.f32 %v864, %v1042
        %v1059 = vmul.f32 %v865, %v1044
        %v1060 = vmul.f32 %v866, %v1044
        %v1061 = vmul.f32 %v867, %v1046
        %v1062 = vmul.f32 %v868, %v1046
        %v1063 = vmul.f32 %v869, %v1048
        %v1064 = vmul.f32 %v870, %v1048
        %v1065 = vmul.f32 %v871, %v1050
        %v1066 = vmul.f32 %v872, %v1050
        %s1067 = scalar_lea.vmem %s162, 384 [#allocation5]
        %1068 = vst [vmem:[%s1067] sm:$0xff] %v1051
        %1069 = vst [vmem:[%s1067 + $0x8] sm:$0xff] %v1052
        %1070 = vst [vmem:[%s1067 + $0x10] sm:$0xff] %v1053
        %1071 = vst [vmem:[%s1067 + $0x18] sm:$0xff] %v1054
        %1072 = vst [vmem:[%s1067 + $0x20] sm:$0xff] %v1055
        %1073 = vst [vmem:[%s1067 + $0x28] sm:$0xff] %v1056
        %1074 = vst [vmem:[%s1067 + $0x30] sm:$0xff] %v1057
        %1075 = vst [vmem:[%s1067 + $0x38] sm:$0xff] %v1058
        %1076 = vst [vmem:[%s1067 + $0x40] sm:$0xff] %v1059
        %1077 = vst [vmem:[%s1067 + $0x48] sm:$0xff] %v1060
        %1078 = vst [vmem:[%s1067 + $0x50] sm:$0xff] %v1061
        %1079 = vst [vmem:[%s1067 + $0x58] sm:$0xff] %v1062
        %1080 = vst [vmem:[%s1067 + $0x60] sm:$0xff] %v1063
        %1081 = vst [vmem:[%s1067 + $0x68] sm:$0xff] %v1064
        %1082 = vst [vmem:[%s1067 + $0x70] sm:$0xff] %v1065
        %1083 = vst [vmem:[%s1067 + $0x78] sm:$0xff] %v1066
        %s1084 = scalar_lea.vmem %s142, 512 [#allocation2]
        %v1085 = vld [vmem:[%s1084] sm:$0xff]
        %v1086 = vld [vmem:[%s1084 + $0x8] sm:$0xff]
        %v1087 = vld [vmem:[%s1084 + $0x10] sm:$0xff]
        %v1088 = vld [vmem:[%s1084 + $0x18] sm:$0xff]
        %v1089 = vld [vmem:[%s1084 + $0x20] sm:$0xff]
        %v1090 = vld [vmem:[%s1084 + $0x28] sm:$0xff]
        %v1091 = vld [vmem:[%s1084 + $0x30] sm:$0xff]
        %v1092 = vld [vmem:[%s1084 + $0x38] sm:$0xff]
        %v1093 = vld [vmem:[%s1084 + $0x40] sm:$0xff]
        %v1094 = vld [vmem:[%s1084 + $0x48] sm:$0xff]
        %v1095 = vld [vmem:[%s1084 + $0x50] sm:$0xff]
        %v1096 = vld [vmem:[%s1084 + $0x58] sm:$0xff]
        %v1097 = vld [vmem:[%s1084 + $0x60] sm:$0xff]
        %v1098 = vld [vmem:[%s1084 + $0x68] sm:$0xff]
        %v1099 = vld [vmem:[%s1084 + $0x70] sm:$0xff]
        %v1100 = vld [vmem:[%s1084 + $0x78] sm:$0xff]
        %v1101 = vadd.f32 %v1085, %v1086
        %1102 = vadd.xlane.f32.xlu0 %v1101
        %v1103 = vpop.xlane.xlu0 %1102
        %v1104 = vadd.f32 %v1087, %v1088
        %1105 = vadd.xlane.f32.xlu0 %v1104
        %v1106 = vpop.xlane.xlu0 %1105
        %v1107 = vadd.f32 %v1089, %v1090
        %1108 = vadd.xlane.f32.xlu0 %v1107
        %v1109 = vpop.xlane.xlu0 %1108
        %v1110 = vadd.f32 %v1091, %v1092
        %1111 = vadd.xlane.f32.xlu0 %v1110
        %v1112 = vpop.xlane.xlu0 %1111
        %v1113 = vadd.f32 %v1093, %v1094
        %1114 = vadd.xlane.f32.xlu0 %v1113
        %v1115 = vpop.xlane.xlu0 %1114
        %v1116 = vadd.f32 %v1095, %v1096
        %1117 = vadd.xlane.f32.xlu0 %v1116
        %v1118 = vpop.xlane.xlu0 %1117
        %v1119 = vadd.f32 %v1097, %v1098
        %1120 = vadd.xlane.f32.xlu0 %v1119
        %v1121 = vpop.xlane.xlu0 %1120
        %v1122 = vadd.f32 %v1099, %v1100
        %1123 = vadd.xlane.f32.xlu0 %v1122
        %v1124 = vpop.xlane.xlu0 %1123
        %v1125 = vmul.f32 %v1103, 0.00390625
        %v1126 = vmul.f32 %v1106, 0.00390625
        %v1127 = vmul.f32 %v1109, 0.00390625
        %v1128 = vmul.f32 %v1112, 0.00390625
        %v1129 = vmul.f32 %v1115, 0.00390625
        %v1130 = vmul.f32 %v1118, 0.00390625
        %v1131 = vmul.f32 %v1121, 0.00390625
        %v1132 = vmul.f32 %v1124, 0.00390625
        %v1133 = vmul.f32 %v165, %v1125
        %v1134 = vmul.f32 %v166, %v1126
        %v1135 = vmul.f32 %v167, %v1127
        %v1136 = vmul.f32 %v168, %v1128
        %v1137 = vmul.f32 %v169, %v1129
        %v1138 = vmul.f32 %v170, %v1130
        %v1139 = vmul.f32 %v171, %v1131
        %v1140 = vmul.f32 %v172, %v1132
        %v1141 = vsel %vm229, %v1133, 0.0
        %v1142 = vsel %vm229, %v1134, 0.0
        %v1143 = vadd.f32 %v1141, %v1142
        %v1144 = vsel %vm229, %v1135, 0.0
        %v1145 = vadd.f32 %v1143, %v1144
        %v1146 = vsel %vm229, %v1136, 0.0
        %v1147 = vadd.f32 %v1145, %v1146
        %v1148 = vsel %vm229, %v1137, 0.0
        %v1149 = vadd.f32 %v1147, %v1148
        %v1150 = vsel %vm229, %v1138, 0.0
        %v1151 = vadd.f32 %v1149, %v1150
        %v1152 = vsel %vm229, %v1139, 0.0
        %v1153 = vadd.f32 %v1151, %v1152
        %v1154 = vsel %vm229, %v1140, 0.0
        %v1155 = vadd.f32 %v1153, %v1154
        %v1156 = vrot.slane %v1155, 4
        %v1157 = vadd.f32 %v1155, %v1156
        %v1158 = vrot.slane %v1157, 2
        %v1159 = vadd.f32 %v1157, %v1158
        %v1160 = vrot.slane %v1159, 1
        %v1161 = vadd.f32 %v1159, %v1160
        %v1162 = vmax.f32 %v1161, 0.0
        %1164 = vrot.lane.b32.xlu0 %v1162, 4
        %v1165 = vpop.permute.xlu0 %1164
        %v1167 = vmul.f32 %v165, %v1165
        %v1168 = vmul.f32 %v166, %v1165
        %v1169 = vmul.f32 %v167, %v1165
        %v1170 = vmul.f32 %v168, %v1165
        %v1171 = vmul.f32 %v169, %v1165
        %v1172 = vmul.f32 %v170, %v1165
        %v1173 = vmul.f32 %v171, %v1165
        %v1174 = vmul.f32 %v172, %v1165
        %1183 = vrot.lane.b32.xlu0 %v1167, 124
        %v1184 = vpop.permute.xlu0 %1183
        %1185 = vrot.lane.b32.xlu0 %v1168, 124
        %v1186 = vpop.permute.xlu0 %1185
        %1187 = vrot.lane.b32.xlu0 %v1169, 124
        %v1188 = vpop.permute.xlu0 %1187
        %1189 = vrot.lane.b32.xlu0 %v1170, 124
        %v1190 = vpop.permute.xlu0 %1189
        %1191 = vrot.lane.b32.xlu0 %v1171, 124
        %v1192 = vpop.permute.xlu0 %1191
        %1193 = vrot.lane.b32.xlu0 %v1172, 124
        %v1194 = vpop.permute.xlu0 %1193
        %1195 = vrot.lane.b32.xlu0 %v1173, 124
        %v1196 = vpop.permute.xlu0 %1195
        %1197 = vrot.lane.b32.xlu0 %v1174, 124
        %v1198 = vpop.permute.xlu0 %1197
        %v1207 = vsel %vm229, %v1184, 0.0
        %1208 = vadd.xlane.f32.xlu0 %v1207
        %v1209 = vpop.xlane.xlu0 %1208
        %v1210 = vsel %vm229, %v1186, 0.0
        %1211 = vadd.xlane.f32.xlu0 %v1210
        %v1212 = vpop.xlane.xlu0 %1211
        %v1213 = vsel %vm229, %v1188, 0.0
        %1214 = vadd.xlane.f32.xlu0 %v1213
        %v1215 = vpop.xlane.xlu0 %1214
        %v1216 = vsel %vm229, %v1190, 0.0
        %1217 = vadd.xlane.f32.xlu0 %v1216
        %v1218 = vpop.xlane.xlu0 %1217
        %v1219 = vsel %vm229, %v1192, 0.0
        %1220 = vadd.xlane.f32.xlu0 %v1219
        %v1221 = vpop.xlane.xlu0 %1220
        %v1222 = vsel %vm229, %v1194, 0.0
        %1223 = vadd.xlane.f32.xlu0 %v1222
        %v1224 = vpop.xlane.xlu0 %1223
        %v1225 = vsel %vm229, %v1196, 0.0
        %1226 = vadd.xlane.f32.xlu0 %v1225
        %v1227 = vpop.xlane.xlu0 %1226
        %v1228 = vsel %vm229, %v1198, 0.0
        %1229 = vadd.xlane.f32.xlu0 %v1228
        %v1230 = vpop.xlane.xlu0 %1229
        %v1231 = vxor.u32 %v1209, 2147483648
        %v1232 = vxor.u32 %v1212, 2147483648
        %v1233 = vxor.u32 %v1215, 2147483648
        %v1234 = vxor.u32 %v1218, 2147483648
        %v1235 = vxor.u32 %v1221, 2147483648
        %v1236 = vxor.u32 %v1224, 2147483648
        %v1237 = vxor.u32 %v1227, 2147483648
        %v1238 = vxor.u32 %v1230, 2147483648
        %v1239 = vmul.f32 %v1231, 1.442695
        %v1240 = vpow.pop %v1239
        %v1241 = vmul.f32 %v1232, 1.442695
        %v1242 = vpow.pop %v1241
        %v1243 = vmul.f32 %v1233, 1.442695
        %v1244 = vpow.pop %v1243
        %v1245 = vmul.f32 %v1234, 1.442695
        %v1246 = vpow.pop %v1245
        %v1247 = vmul.f32 %v1235, 1.442695
        %v1248 = vpow.pop %v1247
        %v1249 = vmul.f32 %v1236, 1.442695
        %v1250 = vpow.pop %v1249
        %v1251 = vmul.f32 %v1237, 1.442695
        %v1252 = vpow.pop %v1251
        %v1253 = vmul.f32 %v1238, 1.442695
        %v1254 = vpow.pop %v1253
        %v1255 = vadd.f32 %v1240, 1.0
        %v1256 = vadd.f32 %v1242, 1.0
        %v1257 = vadd.f32 %v1244, 1.0
        %v1258 = vadd.f32 %v1246, 1.0
        %v1259 = vadd.f32 %v1248, 1.0
        %v1260 = vadd.f32 %v1250, 1.0
        %v1261 = vadd.f32 %v1252, 1.0
        %v1262 = vadd.f32 %v1254, 1.0
        %v1263 = vrcp.pop %v1255
        %v1264 = vmul.f32 1.0, %v1263
        %v1265 = vrcp.pop %v1256
        %v1266 = vmul.f32 1.0, %v1265
        %v1267 = vrcp.pop %v1257
        %v1268 = vmul.f32 1.0, %v1267
        %v1269 = vrcp.pop %v1258
        %v1270 = vmul.f32 1.0, %v1269
        %v1271 = vrcp.pop %v1259
        %v1272 = vmul.f32 1.0, %v1271
        %v1273 = vrcp.pop %v1260
        %v1274 = vmul.f32 1.0, %v1273
        %v1275 = vrcp.pop %v1261
        %v1276 = vmul.f32 1.0, %v1275
        %v1277 = vrcp.pop %v1262
        %v1278 = vmul.f32 1.0, %v1277
        %v1279 = vmul.f32 %v1085, %v1264
        %v1280 = vmul.f32 %v1086, %v1264
        %v1281 = vmul.f32 %v1087, %v1266
        %v1282 = vmul.f32 %v1088, %v1266
        %v1283 = vmul.f32 %v1089, %v1268
        %v1284 = vmul.f32 %v1090, %v1268
        %v1285 = vmul.f32 %v1091, %v1270
        %v1286 = vmul.f32 %v1092, %v1270
        %v1287 = vmul.f32 %v1093, %v1272
        %v1288 = vmul.f32 %v1094, %v1272
        %v1289 = vmul.f32 %v1095, %v1274
        %v1290 = vmul.f32 %v1096, %v1274
        %v1291 = vmul.f32 %v1097, %v1276
        %v1292 = vmul.f32 %v1098, %v1276
        %v1293 = vmul.f32 %v1099, %v1278
        %v1294 = vmul.f32 %v1100, %v1278
        %s1295 = scalar_lea.vmem %s162, 512 [#allocation5]
        %1296 = vst [vmem:[%s1295] sm:$0xff] %v1279
        %1297 = vst [vmem:[%s1295 + $0x8] sm:$0xff] %v1280
        %1298 = vst [vmem:[%s1295 + $0x10] sm:$0xff] %v1281
        %1299 = vst [vmem:[%s1295 + $0x18] sm:$0xff] %v1282
        %1300 = vst [vmem:[%s1295 + $0x20] sm:$0xff] %v1283
        %1301 = vst [vmem:[%s1295 + $0x28] sm:$0xff] %v1284
        %1302 = vst [vmem:[%s1295 + $0x30] sm:$0xff] %v1285
        %1303 = vst [vmem:[%s1295 + $0x38] sm:$0xff] %v1286
        %1304 = vst [vmem:[%s1295 + $0x40] sm:$0xff] %v1287
        %1305 = vst [vmem:[%s1295 + $0x48] sm:$0xff] %v1288
        %1306 = vst [vmem:[%s1295 + $0x50] sm:$0xff] %v1289
        %1307 = vst [vmem:[%s1295 + $0x58] sm:$0xff] %v1290
        %1308 = vst [vmem:[%s1295 + $0x60] sm:$0xff] %v1291
        %1309 = vst [vmem:[%s1295 + $0x68] sm:$0xff] %v1292
        %1310 = vst [vmem:[%s1295 + $0x70] sm:$0xff] %v1293
        %1311 = vst [vmem:[%s1295 + $0x78] sm:$0xff] %v1294
        %s1312 = scalar_lea.vmem %s142, 640 [#allocation2]
        %v1313 = vld [vmem:[%s1312] sm:$0xff]
        %v1314 = vld [vmem:[%s1312 + $0x8] sm:$0xff]
        %v1315 = vld [vmem:[%s1312 + $0x10] sm:$0xff]
        %v1316 = vld [vmem:[%s1312 + $0x18] sm:$0xff]
        %v1317 = vld [vmem:[%s1312 + $0x20] sm:$0xff]
        %v1318 = vld [vmem:[%s1312 + $0x28] sm:$0xff]
        %v1319 = vld [vmem:[%s1312 + $0x30] sm:$0xff]
        %v1320 = vld [vmem:[%s1312 + $0x38] sm:$0xff]
        %v1321 = vld [vmem:[%s1312 + $0x40] sm:$0xff]
        %v1322 = vld [vmem:[%s1312 + $0x48] sm:$0xff]
        %v1323 = vld [vmem:[%s1312 + $0x50] sm:$0xff]
        %v1324 = vld [vmem:[%s1312 + $0x58] sm:$0xff]
        %v1325 = vld [vmem:[%s1312 + $0x60] sm:$0xff]
        %v1326 = vld [vmem:[%s1312 + $0x68] sm:$0xff]
        %v1327 = vld [vmem:[%s1312 + $0x70] sm:$0xff]
        %v1328 = vld [vmem:[%s1312 + $0x78] sm:$0xff]
        %v1329 = vadd.f32 %v1313, %v1314
        %1330 = vadd.xlane.f32.xlu0 %v1329
        %v1331 = vpop.xlane.xlu0 %1330
        %v1332 = vadd.f32 %v1315, %v1316
        %1333 = vadd.xlane.f32.xlu0 %v1332
        %v1334 = vpop.xlane.xlu0 %1333
        %v1335 = vadd.f32 %v1317, %v1318
        %1336 = vadd.xlane.f32.xlu0 %v1335
        %v1337 = vpop.xlane.xlu0 %1336
        %v1338 = vadd.f32 %v1319, %v1320
        %1339 = vadd.xlane.f32.xlu0 %v1338
        %v1340 = vpop.xlane.xlu0 %1339
        %v1341 = vadd.f32 %v1321, %v1322
        %1342 = vadd.xlane.f32.xlu0 %v1341
        %v1343 = vpop.xlane.xlu0 %1342
        %v1344 = vadd.f32 %v1323, %v1324
        %1345 = vadd.xlane.f32.xlu0 %v1344
        %v1346 = vpop.xlane.xlu0 %1345
        %v1347 = vadd.f32 %v1325, %v1326
        %1348 = vadd.xlane.f32.xlu0 %v1347
        %v1349 = vpop.xlane.xlu0 %1348
        %v1350 = vadd.f32 %v1327, %v1328
        %1351 = vadd.xlane.f32.xlu0 %v1350
        %v1352 = vpop.xlane.xlu0 %1351
        %v1353 = vmul.f32 %v1331, 0.00390625
        %v1354 = vmul.f32 %v1334, 0.00390625
        %v1355 = vmul.f32 %v1337, 0.00390625
        %v1356 = vmul.f32 %v1340, 0.00390625
        %v1357 = vmul.f32 %v1343, 0.00390625
        %v1358 = vmul.f32 %v1346, 0.00390625
        %v1359 = vmul.f32 %v1349, 0.00390625
        %v1360 = vmul.f32 %v1352, 0.00390625
        %v1361 = vmul.f32 %v165, %v1353
        %v1362 = vmul.f32 %v166, %v1354
        %v1363 = vmul.f32 %v167, %v1355
        %v1364 = vmul.f32 %v168, %v1356
        %v1365 = vmul.f32 %v169, %v1357
        %v1366 = vmul.f32 %v170, %v1358
        %v1367 = vmul.f32 %v171, %v1359
        %v1368 = vmul.f32 %v172, %v1360
        %v1369 = vsel %vm229, %v1361, 0.0
        %v1370 = vsel %vm229, %v1362, 0.0
        %v1371 = vadd.f32 %v1369, %v1370
        %v1372 = vsel %vm229, %v1363, 0.0
        %v1373 = vadd.f32 %v1371, %v1372
        %v1374 = vsel %vm229, %v1364, 0.0
        %v1375 = vadd.f32 %v1373, %v1374
        %v1376 = vsel %vm229, %v1365, 0.0
        %v1377 = vadd.f32 %v1375, %v1376
        %v1378 = vsel %vm229, %v1366, 0.0
        %v1379 = vadd.f32 %v1377, %v1378
        %v1380 = vsel %vm229, %v1367, 0.0
        %v1381 = vadd.f32 %v1379, %v1380
        %v1382 = vsel %vm229, %v1368, 0.0
        %v1383 = vadd.f32 %v1381, %v1382
        %v1384 = vrot.slane %v1383, 4
        %v1385 = vadd.f32 %v1383, %v1384
        %v1386 = vrot.slane %v1385, 2
        %v1387 = vadd.f32 %v1385, %v1386
        %v1388 = vrot.slane %v1387, 1
        %v1389 = vadd.f32 %v1387, %v1388
        %v1390 = vmax.f32 %v1389, 0.0
        %1392 = vrot.lane.b32.xlu0 %v1390, 4
        %v1393 = vpop.permute.xlu0 %1392
        %v1395 = vmul.f32 %v165, %v1393
        %v1396 = vmul.f32 %v166, %v1393
        %v1397 = vmul.f32 %v167, %v1393
        %v1398 = vmul.f32 %v168, %v1393
        %v1399 = vmul.f32 %v169, %v1393
        %v1400 = vmul.f32 %v170, %v1393
        %v1401 = vmul.f32 %v171, %v1393
        %v1402 = vmul.f32 %v172, %v1393
        %1411 = vrot.lane.b32.xlu0 %v1395, 124
        %v1412 = vpop.permute.xlu0 %1411
        %1413 = vrot.lane.b32.xlu0 %v1396, 124
        %v1414 = vpop.permute.xlu0 %1413
        %1415 = vrot.lane.b32.xlu0 %v1397, 124
        %v1416 = vpop.permute.xlu0 %1415
        %1417 = vrot.lane.b32.xlu0 %v1398, 124
        %v1418 = vpop.permute.xlu0 %1417
        %1419 = vrot.lane.b32.xlu0 %v1399, 124
        %v1420 = vpop.permute.xlu0 %1419
        %1421 = vrot.lane.b32.xlu0 %v1400, 124
        %v1422 = vpop.permute.xlu0 %1421
        %1423 = vrot.lane.b32.xlu0 %v1401, 124
        %v1424 = vpop.permute.xlu0 %1423
        %1425 = vrot.lane.b32.xlu0 %v1402, 124
        %v1426 = vpop.permute.xlu0 %1425
        %v1435 = vsel %vm229, %v1412, 0.0
        %1436 = vadd.xlane.f32.xlu0 %v1435
        %v1437 = vpop.xlane.xlu0 %1436
        %v1438 = vsel %vm229, %v1414, 0.0
        %1439 = vadd.xlane.f32.xlu0 %v1438
        %v1440 = vpop.xlane.xlu0 %1439
        %v1441 = vsel %vm229, %v1416, 0.0
        %1442 = vadd.xlane.f32.xlu0 %v1441
        %v1443 = vpop.xlane.xlu0 %1442
        %v1444 = vsel %vm229, %v1418, 0.0
        %1445 = vadd.xlane.f32.xlu0 %v1444
        %v1446 = vpop.xlane.xlu0 %1445
        %v1447 = vsel %vm229, %v1420, 0.0
        %1448 = vadd.xlane.f32.xlu0 %v1447
        %v1449 = vpop.xlane.xlu0 %1448
        %v1450 = vsel %vm229, %v1422, 0.0
        %1451 = vadd.xlane.f32.xlu0 %v1450
        %v1452 = vpop.xlane.xlu0 %1451
        %v1453 = vsel %vm229, %v1424, 0.0
        %1454 = vadd.xlane.f32.xlu0 %v1453
        %v1455 = vpop.xlane.xlu0 %1454
        %v1456 = vsel %vm229, %v1426, 0.0
        %1457 = vadd.xlane.f32.xlu0 %v1456
        %v1458 = vpop.xlane.xlu0 %1457
        %v1459 = vxor.u32 %v1437, 2147483648
        %v1460 = vxor.u32 %v1440, 2147483648
        %v1461 = vxor.u32 %v1443, 2147483648
        %v1462 = vxor.u32 %v1446, 2147483648
        %v1463 = vxor.u32 %v1449, 2147483648
        %v1464 = vxor.u32 %v1452, 2147483648
        %v1465 = vxor.u32 %v1455, 2147483648
        %v1466 = vxor.u32 %v1458, 2147483648
        %v1467 = vmul.f32 %v1459, 1.442695
        %v1468 = vpow.pop %v1467
        %v1469 = vmul.f32 %v1460, 1.442695
        %v1470 = vpow.pop %v1469
        %v1471 = vmul.f32 %v1461, 1.442695
        %v1472 = vpow.pop %v1471
        %v1473 = vmul.f32 %v1462, 1.442695
        %v1474 = vpow.pop %v1473
        %v1475 = vmul.f32 %v1463, 1.442695
        %v1476 = vpow.pop %v1475
        %v1477 = vmul.f32 %v1464, 1.442695
        %v1478 = vpow.pop %v1477
        %v1479 = vmul.f32 %v1465, 1.442695
        %v1480 = vpow.pop %v1479
        %v1481 = vmul.f32 %v1466, 1.442695
        %v1482 = vpow.pop %v1481
        %v1483 = vadd.f32 %v1468, 1.0
        %v1484 = vadd.f32 %v1470, 1.0
        %v1485 = vadd.f32 %v1472, 1.0
        %v1486 = vadd.f32 %v1474, 1.0
        %v1487 = vadd.f32 %v1476, 1.0
        %v1488 = vadd.f32 %v1478, 1.0
        %v1489 = vadd.f32 %v1480, 1.0
        %v1490 = vadd.f32 %v1482, 1.0
        %v1491 = vrcp.pop %v1483
        %v1492 = vmul.f32 1.0, %v1491
        %v1493 = vrcp.pop %v1484
        %v1494 = vmul.f32 1.0, %v1493
        %v1495 = vrcp.pop %v1485
        %v1496 = vmul.f32 1.0, %v1495
        %v1497 = vrcp.pop %v1486
        %v1498 = vmul.f32 1.0, %v1497
        %v1499 = vrcp.pop %v1487
        %v1500 = vmul.f32 1.0, %v1499
        %v1501 = vrcp.pop %v1488
        %v1502 = vmul.f32 1.0, %v1501
        %v1503 = vrcp.pop %v1489
        %v1504 = vmul.f32 1.0, %v1503
        %v1505 = vrcp.pop %v1490
        %v1506 = vmul.f32 1.0, %v1505
        %v1507 = vmul.f32 %v1313, %v1492
        %v1508 = vmul.f32 %v1314, %v1492
        %v1509 = vmul.f32 %v1315, %v1494
        %v1510 = vmul.f32 %v1316, %v1494
        %v1511 = vmul.f32 %v1317, %v1496
        %v1512 = vmul.f32 %v1318, %v1496
        %v1513 = vmul.f32 %v1319, %v1498
        %v1514 = vmul.f32 %v1320, %v1498
        %v1515 = vmul.f32 %v1321, %v1500
        %v1516 = vmul.f32 %v1322, %v1500
        %v1517 = vmul.f32 %v1323, %v1502
        %v1518 = vmul.f32 %v1324, %v1502
        %v1519 = vmul.f32 %v1325, %v1504
        %v1520 = vmul.f32 %v1326, %v1504
        %v1521 = vmul.f32 %v1327, %v1506
        %v1522 = vmul.f32 %v1328, %v1506
        %s1523 = scalar_lea.vmem %s162, 640 [#allocation5]
        %1524 = vst [vmem:[%s1523] sm:$0xff] %v1507
        %1525 = vst [vmem:[%s1523 + $0x8] sm:$0xff] %v1508
        %1526 = vst [vmem:[%s1523 + $0x10] sm:$0xff] %v1509
        %1527 = vst [vmem:[%s1523 + $0x18] sm:$0xff] %v1510
        %1528 = vst [vmem:[%s1523 + $0x20] sm:$0xff] %v1511
        %1529 = vst [vmem:[%s1523 + $0x28] sm:$0xff] %v1512
        %1530 = vst [vmem:[%s1523 + $0x30] sm:$0xff] %v1513
        %1531 = vst [vmem:[%s1523 + $0x38] sm:$0xff] %v1514
        %1532 = vst [vmem:[%s1523 + $0x40] sm:$0xff] %v1515
        %1533 = vst [vmem:[%s1523 + $0x48] sm:$0xff] %v1516
        %1534 = vst [vmem:[%s1523 + $0x50] sm:$0xff] %v1517
        %1535 = vst [vmem:[%s1523 + $0x58] sm:$0xff] %v1518
        %1536 = vst [vmem:[%s1523 + $0x60] sm:$0xff] %v1519
        %1537 = vst [vmem:[%s1523 + $0x68] sm:$0xff] %v1520
        %1538 = vst [vmem:[%s1523 + $0x70] sm:$0xff] %v1521
        %1539 = vst [vmem:[%s1523 + $0x78] sm:$0xff] %v1522
        %s1540 = scalar_lea.vmem %s142, 768 [#allocation2]
        %v1541 = vld [vmem:[%s1540] sm:$0xff]
        %v1542 = vld [vmem:[%s1540 + $0x8] sm:$0xff]
        %v1543 = vld [vmem:[%s1540 + $0x10] sm:$0xff]
        %v1544 = vld [vmem:[%s1540 + $0x18] sm:$0xff]
        %v1545 = vld [vmem:[%s1540 + $0x20] sm:$0xff]
        %v1546 = vld [vmem:[%s1540 + $0x28] sm:$0xff]
        %v1547 = vld [vmem:[%s1540 + $0x30] sm:$0xff]
        %v1548 = vld [vmem:[%s1540 + $0x38] sm:$0xff]
        %v1549 = vld [vmem:[%s1540 + $0x40] sm:$0xff]
        %v1550 = vld [vmem:[%s1540 + $0x48] sm:$0xff]
        %v1551 = vld [vmem:[%s1540 + $0x50] sm:$0xff]
        %v1552 = vld [vmem:[%s1540 + $0x58] sm:$0xff]
        %v1553 = vld [vmem:[%s1540 + $0x60] sm:$0xff]
        %v1554 = vld [vmem:[%s1540 + $0x68] sm:$0xff]
        %v1555 = vld [vmem:[%s1540 + $0x70] sm:$0xff]
        %v1556 = vld [vmem:[%s1540 + $0x78] sm:$0xff]
        %v1557 = vadd.f32 %v1541, %v1542
        %1558 = vadd.xlane.f32.xlu0 %v1557
        %v1559 = vpop.xlane.xlu0 %1558
        %v1560 = vadd.f32 %v1543, %v1544
        %1561 = vadd.xlane.f32.xlu0 %v1560
        %v1562 = vpop.xlane.xlu0 %1561
        %v1563 = vadd.f32 %v1545, %v1546
        %1564 = vadd.xlane.f32.xlu0 %v1563
        %v1565 = vpop.xlane.xlu0 %1564
        %v1566 = vadd.f32 %v1547, %v1548
        %1567 = vadd.xlane.f32.xlu0 %v1566
        %v1568 = vpop.xlane.xlu0 %1567
        %v1569 = vadd.f32 %v1549, %v1550
        %1570 = vadd.xlane.f32.xlu0 %v1569
        %v1571 = vpop.xlane.xlu0 %1570
        %v1572 = vadd.f32 %v1551, %v1552
        %1573 = vadd.xlane.f32.xlu0 %v1572
        %v1574 = vpop.xlane.xlu0 %1573
        %v1575 = vadd.f32 %v1553, %v1554
        %1576 = vadd.xlane.f32.xlu0 %v1575
        %v1577 = vpop.xlane.xlu0 %1576
        %v1578 = vadd.f32 %v1555, %v1556
        %1579 = vadd.xlane.f32.xlu0 %v1578
        %v1580 = vpop.xlane.xlu0 %1579
        %v1581 = vmul.f32 %v1559, 0.00390625
        %v1582 = vmul.f32 %v1562, 0.00390625
        %v1583 = vmul.f32 %v1565, 0.00390625
        %v1584 = vmul.f32 %v1568, 0.00390625
        %v1585 = vmul.f32 %v1571, 0.00390625
        %v1586 = vmul.f32 %v1574, 0.00390625
        %v1587 = vmul.f32 %v1577, 0.00390625
        %v1588 = vmul.f32 %v1580, 0.00390625
        %v1589 = vmul.f32 %v165, %v1581
        %v1590 = vmul.f32 %v166, %v1582
        %v1591 = vmul.f32 %v167, %v1583
        %v1592 = vmul.f32 %v168, %v1584
        %v1593 = vmul.f32 %v169, %v1585
        %v1594 = vmul.f32 %v170, %v1586
        %v1595 = vmul.f32 %v171, %v1587
        %v1596 = vmul.f32 %v172, %v1588
        %v1597 = vsel %vm229, %v1589, 0.0
        %v1598 = vsel %vm229, %v1590, 0.0
        %v1599 = vadd.f32 %v1597, %v1598
        %v1600 = vsel %vm229, %v1591, 0.0
        %v1601 = vadd.f32 %v1599, %v1600
        %v1602 = vsel %vm229, %v1592, 0.0
        %v1603 = vadd.f32 %v1601, %v1602
        %v1604 = vsel %vm229, %v1593, 0.0
        %v1605 = vadd.f32 %v1603, %v1604
        %v1606 = vsel %vm229, %v1594, 0.0
        %v1607 = vadd.f32 %v1605, %v1606
        %v1608 = vsel %vm229, %v1595, 0.0
        %v1609 = vadd.f32 %v1607, %v1608
        %v1610 = vsel %vm229, %v1596, 0.0
        %v1611 = vadd.f32 %v1609, %v1610
        %v1612 = vrot.slane %v1611, 4
        %v1613 = vadd.f32 %v1611, %v1612
        %v1614 = vrot.slane %v1613, 2
        %v1615 = vadd.f32 %v1613, %v1614
        %v1616 = vrot.slane %v1615, 1
        %v1617 = vadd.f32 %v1615, %v1616
        %v1618 = vmax.f32 %v1617, 0.0
        %1620 = vrot.lane.b32.xlu0 %v1618, 4
        %v1621 = vpop.permute.xlu0 %1620
        %v1623 = vmul.f32 %v165, %v1621
        %v1624 = vmul.f32 %v166, %v1621
        %v1625 = vmul.f32 %v167, %v1621
        %v1626 = vmul.f32 %v168, %v1621
        %v1627 = vmul.f32 %v169, %v1621
        %v1628 = vmul.f32 %v170, %v1621
        %v1629 = vmul.f32 %v171, %v1621
        %v1630 = vmul.f32 %v172, %v1621
        %1639 = vrot.lane.b32.xlu0 %v1623, 124
        %v1640 = vpop.permute.xlu0 %1639
        %1641 = vrot.lane.b32.xlu0 %v1624, 124
        %v1642 = vpop.permute.xlu0 %1641
        %1643 = vrot.lane.b32.xlu0 %v1625, 124
        %v1644 = vpop.permute.xlu0 %1643
        %1645 = vrot.lane.b32.xlu0 %v1626, 124
        %v1646 = vpop.permute.xlu0 %1645
        %1647 = vrot.lane.b32.xlu0 %v1627, 124
        %v1648 = vpop.permute.xlu0 %1647
        %1649 = vrot.lane.b32.xlu0 %v1628, 124
        %v1650 = vpop.permute.xlu0 %1649
        %1651 = vrot.lane.b32.xlu0 %v1629, 124
        %v1652 = vpop.permute.xlu0 %1651
        %1653 = vrot.lane.b32.xlu0 %v1630, 124
        %v1654 = vpop.permute.xlu0 %1653
        %v1663 = vsel %vm229, %v1640, 0.0
        %1664 = vadd.xlane.f32.xlu0 %v1663
        %v1665 = vpop.xlane.xlu0 %1664
        %v1666 = vsel %vm229, %v1642, 0.0
        %1667 = vadd.xlane.f32.xlu0 %v1666
        %v1668 = vpop.xlane.xlu0 %1667
        %v1669 = vsel %vm229, %v1644, 0.0
        %1670 = vadd.xlane.f32.xlu0 %v1669
        %v1671 = vpop.xlane.xlu0 %1670
        %v1672 = vsel %vm229, %v1646, 0.0
        %1673 = vadd.xlane.f32.xlu0 %v1672
        %v1674 = vpop.xlane.xlu0 %1673
        %v1675 = vsel %vm229, %v1648, 0.0
        %1676 = vadd.xlane.f32.xlu0 %v1675
        %v1677 = vpop.xlane.xlu0 %1676
        %v1678 = vsel %vm229, %v1650, 0.0
        %1679 = vadd.xlane.f32.xlu0 %v1678
        %v1680 = vpop.xlane.xlu0 %1679
        %v1681 = vsel %vm229, %v1652, 0.0
        %1682 = vadd.xlane.f32.xlu0 %v1681
        %v1683 = vpop.xlane.xlu0 %1682
        %v1684 = vsel %vm229, %v1654, 0.0
        %1685 = vadd.xlane.f32.xlu0 %v1684
        %v1686 = vpop.xlane.xlu0 %1685
        %v1687 = vxor.u32 %v1665, 2147483648
        %v1688 = vxor.u32 %v1668, 2147483648
        %v1689 = vxor.u32 %v1671, 2147483648
        %v1690 = vxor.u32 %v1674, 2147483648
        %v1691 = vxor.u32 %v1677, 2147483648
        %v1692 = vxor.u32 %v1680, 2147483648
        %v1693 = vxor.u32 %v1683, 2147483648
        %v1694 = vxor.u32 %v1686, 2147483648
        %v1695 = vmul.f32 %v1687, 1.442695
        %v1696 = vpow.pop %v1695
        %v1697 = vmul.f32 %v1688, 1.442695
        %v1698 = vpow.pop %v1697
        %v1699 = vmul.f32 %v1689, 1.442695
        %v1700 = vpow.pop %v1699
        %v1701 = vmul.f32 %v1690, 1.442695
        %v1702 = vpow.pop %v1701
        %v1703 = vmul.f32 %v1691, 1.442695
        %v1704 = vpow.pop %v1703
        %v1705 = vmul.f32 %v1692, 1.442695
        %v1706 = vpow.pop %v1705
        %v1707 = vmul.f32 %v1693, 1.442695
        %v1708 = vpow.pop %v1707
        %v1709 = vmul.f32 %v1694, 1.442695
        %v1710 = vpow.pop %v1709
        %v1711 = vadd.f32 %v1696, 1.0
        %v1712 = vadd.f32 %v1698, 1.0
        %v1713 = vadd.f32 %v1700, 1.0
        %v1714 = vadd.f32 %v1702, 1.0
        %v1715 = vadd.f32 %v1704, 1.0
        %v1716 = vadd.f32 %v1706, 1.0
        %v1717 = vadd.f32 %v1708, 1.0
        %v1718 = vadd.f32 %v1710, 1.0
        %v1719 = vrcp.pop %v1711
        %v1720 = vmul.f32 1.0, %v1719
        %v1721 = vrcp.pop %v1712
        %v1722 = vmul.f32 1.0, %v1721
        %v1723 = vrcp.pop %v1713
        %v1724 = vmul.f32 1.0, %v1723
        %v1725 = vrcp.pop %v1714
        %v1726 = vmul.f32 1.0, %v1725
        %v1727 = vrcp.pop %v1715
        %v1728 = vmul.f32 1.0, %v1727
        %v1729 = vrcp.pop %v1716
        %v1730 = vmul.f32 1.0, %v1729
        %v1731 = vrcp.pop %v1717
        %v1732 = vmul.f32 1.0, %v1731
        %v1733 = vrcp.pop %v1718
        %v1734 = vmul.f32 1.0, %v1733
        %v1735 = vmul.f32 %v1541, %v1720
        %v1736 = vmul.f32 %v1542, %v1720
        %v1737 = vmul.f32 %v1543, %v1722
        %v1738 = vmul.f32 %v1544, %v1722
        %v1739 = vmul.f32 %v1545, %v1724
        %v1740 = vmul.f32 %v1546, %v1724
        %v1741 = vmul.f32 %v1547, %v1726
        %v1742 = vmul.f32 %v1548, %v1726
        %v1743 = vmul.f32 %v1549, %v1728
        %v1744 = vmul.f32 %v1550, %v1728
        %v1745 = vmul.f32 %v1551, %v1730
        %v1746 = vmul.f32 %v1552, %v1730
        %v1747 = vmul.f32 %v1553, %v1732
        %v1748 = vmul.f32 %v1554, %v1732
        %v1749 = vmul.f32 %v1555, %v1734
        %v1750 = vmul.f32 %v1556, %v1734
        %s1751 = scalar_lea.vmem %s162, 768 [#allocation5]
        %1752 = vst [vmem:[%s1751] sm:$0xff] %v1735
        %1753 = vst [vmem:[%s1751 + $0x8] sm:$0xff] %v1736
        %1754 = vst [vmem:[%s1751 + $0x10] sm:$0xff] %v1737
        %1755 = vst [vmem:[%s1751 + $0x18] sm:$0xff] %v1738
        %1756 = vst [vmem:[%s1751 + $0x20] sm:$0xff] %v1739
        %1757 = vst [vmem:[%s1751 + $0x28] sm:$0xff] %v1740
        %1758 = vst [vmem:[%s1751 + $0x30] sm:$0xff] %v1741
        %1759 = vst [vmem:[%s1751 + $0x38] sm:$0xff] %v1742
        %1760 = vst [vmem:[%s1751 + $0x40] sm:$0xff] %v1743
        %1761 = vst [vmem:[%s1751 + $0x48] sm:$0xff] %v1744
        %1762 = vst [vmem:[%s1751 + $0x50] sm:$0xff] %v1745
        %1763 = vst [vmem:[%s1751 + $0x58] sm:$0xff] %v1746
        %1764 = vst [vmem:[%s1751 + $0x60] sm:$0xff] %v1747
        %1765 = vst [vmem:[%s1751 + $0x68] sm:$0xff] %v1748
        %1766 = vst [vmem:[%s1751 + $0x70] sm:$0xff] %v1749
        %1767 = vst [vmem:[%s1751 + $0x78] sm:$0xff] %v1750
        %s1768 = scalar_lea.vmem %s142, 896 [#allocation2]
        %v1769 = vld [vmem:[%s1768] sm:$0xff]
        %v1770 = vld [vmem:[%s1768 + $0x8] sm:$0xff]
        %v1771 = vld [vmem:[%s1768 + $0x10] sm:$0xff]
        %v1772 = vld [vmem:[%s1768 + $0x18] sm:$0xff]
        %v1773 = vld [vmem:[%s1768 + $0x20] sm:$0xff]
        %v1774 = vld [vmem:[%s1768 + $0x28] sm:$0xff]
        %v1775 = vld [vmem:[%s1768 + $0x30] sm:$0xff]
        %v1776 = vld [vmem:[%s1768 + $0x38] sm:$0xff]
        %v1777 = vld [vmem:[%s1768 + $0x40] sm:$0xff]
        %v1778 = vld [vmem:[%s1768 + $0x48] sm:$0xff]
        %v1779 = vld [vmem:[%s1768 + $0x50] sm:$0xff]
        %v1780 = vld [vmem:[%s1768 + $0x58] sm:$0xff]
        %v1781 = vld [vmem:[%s1768 + $0x60] sm:$0xff]
        %v1782 = vld [vmem:[%s1768 + $0x68] sm:$0xff]
        %v1783 = vld [vmem:[%s1768 + $0x70] sm:$0xff]
        %v1784 = vld [vmem:[%s1768 + $0x78] sm:$0xff]
        %v1785 = vadd.f32 %v1769, %v1770
        %1786 = vadd.xlane.f32.xlu0 %v1785
        %v1787 = vpop.xlane.xlu0 %1786
        %v1788 = vadd.f32 %v1771, %v1772
        %1789 = vadd.xlane.f32.xlu0 %v1788
        %v1790 = vpop.xlane.xlu0 %1789
        %v1791 = vadd.f32 %v1773, %v1774
        %1792 = vadd.xlane.f32.xlu0 %v1791
        %v1793 = vpop.xlane.xlu0 %1792
        %v1794 = vadd.f32 %v1775, %v1776
        %1795 = vadd.xlane.f32.xlu0 %v1794
        %v1796 = vpop.xlane.xlu0 %1795
        %v1797 = vadd.f32 %v1777, %v1778
        %1798 = vadd.xlane.f32.xlu0 %v1797
        %v1799 = vpop.xlane.xlu0 %1798
        %v1800 = vadd.f32 %v1779, %v1780
        %1801 = vadd.xlane.f32.xlu0 %v1800
        %v1802 = vpop.xlane.xlu0 %1801
        %v1803 = vadd.f32 %v1781, %v1782
        %1804 = vadd.xlane.f32.xlu0 %v1803
        %v1805 = vpop.xlane.xlu0 %1804
        %v1806 = vadd.f32 %v1783, %v1784
        %1807 = vadd.xlane.f32.xlu0 %v1806
        %v1808 = vpop.xlane.xlu0 %1807
        %v1809 = vmul.f32 %v1787, 0.00390625
        %v1810 = vmul.f32 %v1790, 0.00390625
        %v1811 = vmul.f32 %v1793, 0.00390625
        %v1812 = vmul.f32 %v1796, 0.00390625
        %v1813 = vmul.f32 %v1799, 0.00390625
        %v1814 = vmul.f32 %v1802, 0.00390625
        %v1815 = vmul.f32 %v1805, 0.00390625
        %v1816 = vmul.f32 %v1808, 0.00390625
        %v1817 = vmul.f32 %v165, %v1809
        %v1818 = vmul.f32 %v166, %v1810
        %v1819 = vmul.f32 %v167, %v1811
        %v1820 = vmul.f32 %v168, %v1812
        %v1821 = vmul.f32 %v169, %v1813
        %v1822 = vmul.f32 %v170, %v1814
        %v1823 = vmul.f32 %v171, %v1815
        %v1824 = vmul.f32 %v172, %v1816
        %v1825 = vsel %vm229, %v1817, 0.0
        %v1826 = vsel %vm229, %v1818, 0.0
        %v1827 = vadd.f32 %v1825, %v1826
        %v1828 = vsel %vm229, %v1819, 0.0
        %v1829 = vadd.f32 %v1827, %v1828
        %v1830 = vsel %vm229, %v1820, 0.0
        %v1831 = vadd.f32 %v1829, %v1830
        %v1832 = vsel %vm229, %v1821, 0.0
        %v1833 = vadd.f32 %v1831, %v1832
        %v1834 = vsel %vm229, %v1822, 0.0
        %v1835 = vadd.f32 %v1833, %v1834
        %v1836 = vsel %vm229, %v1823, 0.0
        %v1837 = vadd.f32 %v1835, %v1836
        %v1838 = vsel %vm229, %v1824, 0.0
        %v1839 = vadd.f32 %v1837, %v1838
        %v1840 = vrot.slane %v1839, 4
        %v1841 = vadd.f32 %v1839, %v1840
        %v1842 = vrot.slane %v1841, 2
        %v1843 = vadd.f32 %v1841, %v1842
        %v1844 = vrot.slane %v1843, 1
        %v1845 = vadd.f32 %v1843, %v1844
        %v1846 = vmax.f32 %v1845, 0.0
        %1848 = vrot.lane.b32.xlu0 %v1846, 4
        %v1849 = vpop.permute.xlu0 %1848
        %v1851 = vmul.f32 %v165, %v1849
        %v1852 = vmul.f32 %v166, %v1849
        %v1853 = vmul.f32 %v167, %v1849
        %v1854 = vmul.f32 %v168, %v1849
        %v1855 = vmul.f32 %v169, %v1849
        %v1856 = vmul.f32 %v170, %v1849
        %v1857 = vmul.f32 %v171, %v1849
        %v1858 = vmul.f32 %v172, %v1849
        %1867 = vrot.lane.b32.xlu0 %v1851, 124
        %v1868 = vpop.permute.xlu0 %1867
        %1869 = vrot.lane.b32.xlu0 %v1852, 124
        %v1870 = vpop.permute.xlu0 %1869
        %1871 = vrot.lane.b32.xlu0 %v1853, 124
        %v1872 = vpop.permute.xlu0 %1871
        %1873 = vrot.lane.b32.xlu0 %v1854, 124
        %v1874 = vpop.permute.xlu0 %1873
        %1875 = vrot.lane.b32.xlu0 %v1855, 124
        %v1876 = vpop.permute.xlu0 %1875
        %1877 = vrot.lane.b32.xlu0 %v1856, 124
        %v1878 = vpop.permute.xlu0 %1877
        %1879 = vrot.lane.b32.xlu0 %v1857, 124
        %v1880 = vpop.permute.xlu0 %1879
        %1881 = vrot.lane.b32.xlu0 %v1858, 124
        %v1882 = vpop.permute.xlu0 %1881
        %v1891 = vsel %vm229, %v1868, 0.0
        %1892 = vadd.xlane.f32.xlu0 %v1891
        %v1893 = vpop.xlane.xlu0 %1892
        %v1894 = vsel %vm229, %v1870, 0.0
        %1895 = vadd.xlane.f32.xlu0 %v1894
        %v1896 = vpop.xlane.xlu0 %1895
        %v1897 = vsel %vm229, %v1872, 0.0
        %1898 = vadd.xlane.f32.xlu0 %v1897
        %v1899 = vpop.xlane.xlu0 %1898
        %v1900 = vsel %vm229, %v1874, 0.0
        %1901 = vadd.xlane.f32.xlu0 %v1900
        %v1902 = vpop.xlane.xlu0 %1901
        %v1903 = vsel %vm229, %v1876, 0.0
        %1904 = vadd.xlane.f32.xlu0 %v1903
        %v1905 = vpop.xlane.xlu0 %1904
        %v1906 = vsel %vm229, %v1878, 0.0
        %1907 = vadd.xlane.f32.xlu0 %v1906
        %v1908 = vpop.xlane.xlu0 %1907
        %v1909 = vsel %vm229, %v1880, 0.0
        %1910 = vadd.xlane.f32.xlu0 %v1909
        %v1911 = vpop.xlane.xlu0 %1910
        %v1912 = vsel %vm229, %v1882, 0.0
        %1913 = vadd.xlane.f32.xlu0 %v1912
        %v1914 = vpop.xlane.xlu0 %1913
        %v1915 = vxor.u32 %v1893, 2147483648
        %v1916 = vxor.u32 %v1896, 2147483648
        %v1917 = vxor.u32 %v1899, 2147483648
        %v1918 = vxor.u32 %v1902, 2147483648
        %v1919 = vxor.u32 %v1905, 2147483648
        %v1920 = vxor.u32 %v1908, 2147483648
        %v1921 = vxor.u32 %v1911, 2147483648
        %v1922 = vxor.u32 %v1914, 2147483648
        %v1923 = vmul.f32 %v1915, 1.442695
        %v1924 = vpow.pop %v1923
        %v1925 = vmul.f32 %v1916, 1.442695
        %v1926 = vpow.pop %v1925
        %v1927 = vmul.f32 %v1917, 1.442695
        %v1928 = vpow.pop %v1927
        %v1929 = vmul.f32 %v1918, 1.442695
        %v1930 = vpow.pop %v1929
        %v1931 = vmul.f32 %v1919, 1.442695
        %v1932 = vpow.pop %v1931
        %v1933 = vmul.f32 %v1920, 1.442695
        %v1934 = vpow.pop %v1933
        %v1935 = vmul.f32 %v1921, 1.442695
        %v1936 = vpow.pop %v1935
        %v1937 = vmul.f32 %v1922, 1.442695
        %v1938 = vpow.pop %v1937
        %v1939 = vadd.f32 %v1924, 1.0
        %v1940 = vadd.f32 %v1926, 1.0
        %v1941 = vadd.f32 %v1928, 1.0
        %v1942 = vadd.f32 %v1930, 1.0
        %v1943 = vadd.f32 %v1932, 1.0
        %v1944 = vadd.f32 %v1934, 1.0
        %v1945 = vadd.f32 %v1936, 1.0
        %v1946 = vadd.f32 %v1938, 1.0
        %v1947 = vrcp.pop %v1939
        %v1948 = vmul.f32 1.0, %v1947
        %v1949 = vrcp.pop %v1940
        %v1950 = vmul.f32 1.0, %v1949
        %v1951 = vrcp.pop %v1941
        %v1952 = vmul.f32 1.0, %v1951
        %v1953 = vrcp.pop %v1942
        %v1954 = vmul.f32 1.0, %v1953
        %v1955 = vrcp.pop %v1943
        %v1956 = vmul.f32 1.0, %v1955
        %v1957 = vrcp.pop %v1944
        %v1958 = vmul.f32 1.0, %v1957
        %v1959 = vrcp.pop %v1945
        %v1960 = vmul.f32 1.0, %v1959
        %v1961 = vrcp.pop %v1946
        %v1962 = vmul.f32 1.0, %v1961
        %v1963 = vmul.f32 %v1769, %v1948
        %v1964 = vmul.f32 %v1770, %v1948
        %v1965 = vmul.f32 %v1771, %v1950
        %v1966 = vmul.f32 %v1772, %v1950
        %v1967 = vmul.f32 %v1773, %v1952
        %v1968 = vmul.f32 %v1774, %v1952
        %v1969 = vmul.f32 %v1775, %v1954
        %v1970 = vmul.f32 %v1776, %v1954
        %v1971 = vmul.f32 %v1777, %v1956
        %v1972 = vmul.f32 %v1778, %v1956
        %v1973 = vmul.f32 %v1779, %v1958
        %v1974 = vmul.f32 %v1780, %v1958
        %v1975 = vmul.f32 %v1781, %v1960
        %v1976 = vmul.f32 %v1782, %v1960
        %v1977 = vmul.f32 %v1783, %v1962
        %v1978 = vmul.f32 %v1784, %v1962
        %s1979 = scalar_lea.vmem %s162, 896 [#allocation5]
        %1980 = vst [vmem:[%s1979] sm:$0xff] %v1963
        %1981 = vst [vmem:[%s1979 + $0x8] sm:$0xff] %v1964
        %1982 = vst [vmem:[%s1979 + $0x10] sm:$0xff] %v1965
        %1983 = vst [vmem:[%s1979 + $0x18] sm:$0xff] %v1966
        %1984 = vst [vmem:[%s1979 + $0x20] sm:$0xff] %v1967
        %1985 = vst [vmem:[%s1979 + $0x28] sm:$0xff] %v1968
        %1986 = vst [vmem:[%s1979 + $0x30] sm:$0xff] %v1969
        %1987 = vst [vmem:[%s1979 + $0x38] sm:$0xff] %v1970
        %1988 = vst [vmem:[%s1979 + $0x40] sm:$0xff] %v1971
        %1989 = vst [vmem:[%s1979 + $0x48] sm:$0xff] %v1972
        %1990 = vst [vmem:[%s1979 + $0x50] sm:$0xff] %v1973
        %1991 = vst [vmem:[%s1979 + $0x58] sm:$0xff] %v1974
        %1992 = vst [vmem:[%s1979 + $0x60] sm:$0xff] %v1975
        %1993 = vst [vmem:[%s1979 + $0x68] sm:$0xff] %v1976
        %1994 = vst [vmem:[%s1979 + $0x70] sm:$0xff] %v1977
        %1995 = vst [vmem:[%s1979 + $0x78] sm:$0xff] %v1978
        %s1996 = sand.u32 %s74, 1
        %s1997 = scalar_lea.sflag [#allocation4], %s1996
        %s1998 = sand.u32 %s74, 1
        %s1999 = smul.addr %s1998, 1024
        %s2000 = scalar_lea.vmem [#allocation5], %s1999
        // Predicated region
        $region33: #{tpu_custom_call.1} parent=27 // pred_check
          %p2001 = pneg %p84
        $region34: #{tpu_custom_call.1} parent=27 // pred_check_branch
          %2003 = sbr.rel (%p2001) target = $region36
        $region35: #{tpu_custom_call.1} parent=27 // pred_region
          %s2004 = smul.u32 8, %s19
          %s2006 = ssub.s32 16384, 16384
          %2007 = vsyncadd %s1997, %s2006
          %s2008 = smul.addr %s2004, 16
          %s2009 = smul.addr %s2008, 128
          %s2010 = scalar_lea.hbm %s2, %s2009
          %s2011 = sshll.u32 %s2000, 4
          %s2012 = int_to_ptr.vmem [resolvable:$true] %s2011
          %2017 = dma.vmem_to_hbm [thread:$0]  %s2012, 16384, %s2010, %s1997, 256, 256, 16
        $region36: #{tpu_custom_call.1} parent=27 // pred_fallthru
          _
      $region28: #{tpu_custom_call.1} parent=5 // pred_fallthru
        _
      %p2018 = scmp.le.s32.totalorder 2, %s14
      // Predicated region
      $region37: #{tpu_custom_call.1} parent=5 // pred_check
        %p2019 = pneg %p2018
      $region38: #{tpu_custom_call.1} parent=5 // pred_check_branch
        %2021 = sbr.rel (%p2019) target = $region40
      $region39: #{tpu_custom_call.1} parent=5 // pred_region
        %s2022 = ssub.s32 %s14, 2
        // Predicated region
        $region41: #{tpu_custom_call.1} parent=39 // pred_check
          %p2023 = pneg %p90
        $region42: #{tpu_custom_call.1} parent=39 // pred_check_branch
          %2025 = sbr.rel (%p2023) target = $region44
        $region43: #{tpu_custom_call.1} parent=39 // pred_region
          %s2026 = sand.u32 %s75, 1
          %s2027 = scalar_lea.sflag [#allocation4], %s2026
          %s2028 = sand.u32 %s75, 1
          %s2029 = smul.addr %s2028, 1024
          %s2030 = scalar_lea.vmem [#allocation5], %s2029
          %2031 = dma.done %s2027, 16384
        $region44: #{tpu_custom_call.1} parent=39 // pred_fallthru
          _
      $region40: #{tpu_custom_call.1} parent=5 // pred_fallthru
        _
    $region6: #{tpu_custom_call.1} parent=1 // loop_footer
      %s18 = sadd.s32 1, %s14
    $region7: #{tpu_custom_call.1} parent=1 // loop_footer_branch
      %13 = sbr.rel target = $region3
    $region8: #{tpu_custom_call.1} parent=1 // loop_exit
      _
    %2032 = vsyncpa [#allocation3], 1
    %s2033 = scalar_lea.sflag [#allocation3], 1
    %2034 = vsyncpa %s2033, 1
    %2035 = vsyncpa [#allocation4], 1
    %s2036 = scalar_lea.sflag [#allocation4], 1
    %2037 = vsyncpa %s2036, 1

</llo_original>
